<compile_context>
chip_gen: v6e
topology: v6e:2x2x1
jax: 0.10.0
libtpu: 0.0.40
codegen_flags: <defaults>
</compile_context>

<pallas_src>
import functools

import jax
import jax.numpy as jnp
from jax.experimental import pallas as pl
from jax.experimental.pallas import tpu as pltpu


# ----------------------------------------------------------------------------
# Shared kernel body: per-head context matmul, emitted in 128-lane head groups.
# ----------------------------------------------------------------------------
def _head_groups(nh, d):
    """Group heads so each output group tile is (close to) 128 lanes wide."""
    gh = max(1, 128 // d)
    gh = min(gh, nh)
    groups = []
    h0 = 0
    while h0 < nh:
        groups.append((h0, min(gh, nh - h0)))
        h0 += gh
    return groups


def _emit_context_slab(attn_at, val_ref, out_ref, *, scale):
    """out[b, :, h*D:(h+1)*D] = (scale * attn_at(b, h)) @ val_ref[b, h].

    attn_at(b, h) returns the [S, S] attention matrix feeding output head slot
    (b, h): identity mapping on the deterministic path, SMEM-indexed gather on
    the sampled path.  Heads are processed in 128-lane groups; each group's
    result is stored immediately with one lane-aligned full-width store, so
    stores are unmasked and at most `heads_per_group` tiny matmul results are
    live at a time (bounded vreg pressure, no 12-way concat epilogue).
    """
    B, NH, S, D = val_ref.shape
    for b in range(B):                                 # static, unrolled
        for h0, gh in _head_groups(NH, D):             # static, unrolled
            parts = []
            for j in range(gh):
                h = h0 + j
                a = attn_at(b, h)                      # [S, S]
                if scale != 1.0:                       # scale is a static float
                    a = a * scale                      # S <= D -> cheaper operand
                parts.append(jnp.dot(a, val_ref[b, h],
                                     preferred_element_type=jnp.float32))
            tile = parts[0] if gh == 1 else jnp.concatenate(parts, axis=-1)
            out_ref[b, :, h0 * D:(h0 + gh) * D] = tile.astype(out_ref.dtype)


# ----------------------------------------------------------------------------
# Kernel 1 (deterministic path): fused seq-mean + all-head context matmul.
# ----------------------------------------------------------------------------
def _static_kernel(x_ref, attn_ref, val_ref, mean_ref, out_ref, *, scale):
    # x_ref: (B, S, H); attn_ref: (B, NH, S, S); val_ref: (B, NH, S, D)
    # mean_ref: (B, H); out_ref: (B, S, NH*D)
    mean_ref[...] = jnp.mean(x_ref[...], axis=1).astype(mean_ref.dtype)
    _emit_context_slab(lambda b, h: attn_ref[b, h], val_ref, out_ref, scale=scale)


# ----------------------------------------------------------------------------
# Kernel 2 (sampled path): in-kernel head gather from SMEM-prefetched indices.
# ----------------------------------------------------------------------------
def _gather_kernel(idx_ref, attn_ref, val_ref, out_ref):
    # idx_ref: (B, NH) int32 in SMEM (scalar prefetch).
    _emit_context_slab(lambda b, h: attn_ref[b, idx_ref[b, h]],
                       val_ref, out_ref, scale=1.0)


# ----------------------------------------------------------------------------
# pallas_call wrappers (single invocation each -- no grid pipelining needed).
# ----------------------------------------------------------------------------
def _cost(B, NH, S, D, itemsize, extra_bytes=0):
    return pl.CostEstimate(
        flops=2 * B * NH * S * S * D,
        transcendentals=0,
        bytes_accessed=itemsize * (B * NH * S * S + 2 * B * NH * S * D) + extra_bytes,
    )


def attn_context_static(input_data_seq, attention_probs, value_layer, *, scale):
    """Returns (x_mean [B, H], context slab [B, S, NH*D]) in one kernel call."""
    B, S, H = input_data_seq.shape
    _, NH, _, _ = attention_probs.shape
    D = value_layer.shape[-1]
    itemsize = value_layer.dtype.itemsize
    # NOTE: whole problem resident in VMEM (~100 KB f32).  If S ever scales up,
    # re-introduce key-axis tiling / bf16 operands and set vmem_limit_bytes
    # (v7x has only 64 MiB physical VMEM).
    kernel = functools.partial(_static_kernel, scale=scale)
    return pl.pallas_call(
        kernel,
        out_shape=(jax.ShapeDtypeStruct((B, H), input_data_seq.dtype),
                   jax.ShapeDtypeStruct((B, S, NH * D), value_layer.dtype)),
        cost_estimate=_cost(
            B, NH, S, D, itemsize,
            extra_bytes=input_data_seq.dtype.itemsize * (B * S * H + B * H)),
    )(input_data_seq, attention_probs, value_layer)


def attn_context_gather(attention_probs, value_layer, head_idx):
    """w[b, h] = attn[b, head_idx[b, h]] @ value[b, h]; returns [B, S, NH*D]."""
    B, NH, S, _ = attention_probs.shape
    D = value_layer.shape[-1]
    return pl.pallas_call(
        _gather_kernel,
        out_shape=jax.ShapeDtypeStruct((B, S, NH * D), value_layer.dtype),
        grid_spec=pltpu.PrefetchScalarGridSpec(
            num_scalar_prefetch=1,
            grid=(1,),   # single step: whole problem resident, no pipeline
            in_specs=[
                pl.BlockSpec((B, NH, S, S), lambda i, idx: (0, 0, 0, 0)),
                pl.BlockSpec((B, NH, S, D), lambda i, idx: (0, 0, 0, 0)),
            ],
            out_specs=pl.BlockSpec((B, S, NH * D), lambda i, idx: (0, 0, 0)),
        ),
        compiler_params=pltpu.CompilerParams(dimension_semantics=("arbitrary",)),
        cost_estimate=_cost(B, NH, S, D, value_layer.dtype.itemsize,
                            extra_bytes=4 * B * NH),
    )(head_idx, attention_probs, value_layer)


# ----------------------------------------------------------------------------
# Forward pass (mirrors MixtureAttentionWeightExpert.forward)
# ----------------------------------------------------------------------------
def mixture_attention_weight_expert_forward(params, input_data_seq, attention_probs,
                                            value_layer, *, evaluate=False,
                                            every_five_steps=False, rng=None):
    B, S, H = input_data_seq.shape
    _, NH, _, _ = attention_probs.shape
    D = value_layer.shape[-1]
    per_head_num = params["per_head_num"]
    short_hidden = H // per_head_num
    scaleup_factor = 1.0 / per_head_num

    def expert_logits(x_mean):
        # tiny expert MLP (B x 12 x short_hidden): kept in plain JAX.
        # TODO(synk): exact erf-GELU is not in the Mosaic elementwise set; this
        # negligible per-example MLP stays in JAX (XLA fuses it into one tiny op).
        x12 = x_mean.reshape(B, 12, short_hidden)
        h1 = jax.nn.gelu(x12 @ params["w1"] + params["b1"], approximate=False)
        return h1 @ params["w2"] + params["b2"]              # [B, 12, G] pre-softmax

    if evaluate or every_five_steps:
        # deterministic path: context = permute((1/per_head_num * attn) @ value)
        # single fused Pallas call produces both the seq-mean and the context slab.
        x_mean, w_slab = attn_context_static(input_data_seq, attention_probs,
                                             value_layer, scale=scaleup_factor)
        prob = jax.nn.softmax(expert_logits(x_mean), axis=-1)
    else:
        if rng is None:
            raise ValueError("rng is required for the sampled (default) path")
        x_mean = jnp.mean(input_data_seq, axis=1)            # XLA fuses with the MLP
        logits = expert_logits(x_mean)
        prob = jax.nn.softmax(logits, axis=-1)
        # Sample from the logits directly (same distribution as Categorical(prob),
        # avoids log(0) = -inf on underflowed softmax outputs).
        # NOTE (faithful to torch): sampled indices lie in [0, num_groups) but
        # index the NH-head axis of attention_probs.
        # TODO(synk): torch.distributions.Categorical RNG stream cannot be
        # bit-matched in JAX; jax.random.categorical is used instead.
        head_idx = jax.random.categorical(rng, logits, axis=-1).astype(jnp.int32)
        w_slab = attn_context_gather(attention_probs, value_layer, head_idx)

    # free reshape: [B, S, NH*D] -> [B, S, NH, D] == torch's w.permute(0, 2, 1, 3)
    context = w_slab.reshape(B, S, NH, D)
    return prob, context, value_layer


# ----------------------------------------------------------------------------
if __name__ == "__main__":
    B, S, NH = 2, 16, 12
    hidden_size = 384
    per_head_num = 12                      # the torch module hard-codes 12 slots
    num_groups = 4
    head_dim = hidden_size // NH           # 32
    short_hidden = hidden_size // per_head_num  # 32

    key = jax.random.PRNGKey(0)
    ks = jax.random.split(key, 8)
    input_data_seq = jax.random.normal(ks[0], (B, S, hidden_size), jnp.float32)
    attention_probs = jax.nn.softmax(
        jax.random.normal(ks[1], (B, NH, S, S), jnp.float32), axis=-1)
    value_layer = jax.random.normal(ks[2], (B, NH, S, head_dim), jnp.float32)

    params = {
        "per_head_num": per_head_num,
        # dense1: Linear(short_hidden -> num_groups); stored as [in, out]
        "w1": 0.05 * jax.random.normal(ks[3], (short_hidden, num_groups), jnp.float32),
        "b1": 0.01 * jax.random.normal(ks[4], (num_groups,), jnp.float32),
        # dense2: Linear(num_groups -> num_groups)
        "w2": 0.05 * jax.random.normal(ks[5], (num_groups, num_groups), jnp.float32),
        "b2": 0.01 * jax.random.normal(ks[6], (num_groups,), jnp.float32),
    }

    # Default path (evaluate=False, every_five_steps=False): sampled heads.
    prob, context, v_out = mixture_attention_weight_expert_forward(
        params, input_data_seq, attention_probs, value_layer, rng=ks[7])
    jax.block_until_ready((prob, context, v_out))
    assert prob.shape == (B, 12, num_groups)
    assert context.shape == (B, S, NH, head_dim)

    # Deterministic path (evaluate=True).
    prob_e, context_e, _ = mixture_attention_weight_expert_forward(
        params, input_data_seq, attention_probs, value_layer, evaluate=True)
    jax.block_until_ready((prob_e, context_e))

    # ---- Plain-JAX reference checks -----------------------------------------
    x_mean_ref = jnp.mean(input_data_seq, axis=1)
    x12_ref = x_mean_ref.reshape(B, 12, short_hidden)
    h1_ref = jax.nn.gelu(x12_ref @ params["w1"] + params["b1"], approximate=False)
    logits_ref = h1_ref @ params["w2"] + params["b2"]
    prob_ref = jax.nn.softmax(logits_ref, axis=-1)

    # deterministic path reference
    ctx_ref = jnp.einsum("bhqk,bhkd->bqhd",
                         (1.0 / per_head_num) * attention_probs, value_layer)
    assert jnp.allclose(prob_e, prob_ref, atol=1e-3, rtol=1e-3)
    assert jnp.allclose(context_e, ctx_ref, atol=1e-3, rtol=1e-3)

    # sampled path reference (same rng + same logits -> same indices)
    head_idx_ref = jax.random.categorical(ks[7], logits_ref, axis=-1).astype(jnp.int32)
    attn_gathered = attention_probs[jnp.arange(B)[:, None], head_idx_ref]  # [B,NH,S,S]
    ctx_sampled_ref = jnp.einsum("bhqk,bhkd->bqhd", attn_gathered, value_layer)
    assert jnp.allclose(prob, prob_ref, atol=1e-3, rtol=1e-3)
    assert jnp.allclose(context, ctx_sampled_ref, atol=1e-3, rtol=1e-3)

    print("KERNEL_OK")
</pallas_src>

<mosaic_0001>
module attributes {stable_mosaic.version = 11 : i64} {
  func.func @_gather_kernel(%arg0: i32, %arg1: memref<2x12xi32, #tpu.memory_space<smem>>, %arg2: memref<2x12x16x16xf32, #tpu.memory_space<vmem>>, %arg3: memref<2x12x16x32xf32, #tpu.memory_space<vmem>>, %arg4: memref<2x16x384xf32, #tpu.memory_space<vmem>>) attributes {dimension_semantics = [#tpu.dimension_semantics<arbitrary>], iteration_bounds = array<i64: 1>, scalar_prefetch = 1 : i64, scratch_operands = 0 : i64, tpu.core_type = #tpu.core_type<tc>, window_params = [{pipeline_mode = #tpu.pipeline_mode<synchronous>, transform_indices = @transform_0, window_bounds = array<i64: 2, 12, 16, 16>}, {pipeline_mode = #tpu.pipeline_mode<synchronous>, transform_indices = @transform_1, window_bounds = array<i64: 2, 12, 16, 32>}, {pipeline_mode = #tpu.pipeline_mode<synchronous>, transform_indices = @transform_2, window_bounds = array<i64: 2, 16, 384>}]} {
    %c0 = arith.constant 0 : index
    %c0_0 = arith.constant 0 : index
    %0 = memref.load %arg1[%c0, %c0_0] : memref<2x12xi32, #tpu.memory_space<smem>>
    %c0_1 = arith.constant 0 : index
    %1 = arith.index_cast %0 : i32 to index
    %c0_2 = arith.constant 0 : index
    %c0_3 = arith.constant 0 : index
    %2 = vector.load %arg2[%c0_1, %1, %c0_2, %c0_3] : memref<2x12x16x16xf32, #tpu.memory_space<vmem>>, vector<1x1x16x16xf32>
    %3 = vector.shape_cast %2 : vector<1x1x16x16xf32> to vector<16x16xf32>
    %c0_4 = arith.constant 0 : index
    %c0_5 = arith.constant 0 : index
    %c0_6 = arith.constant 0 : index
    %c0_7 = arith.constant 0 : index
    %4 = vector.load %arg3[%c0_4, %c0_5, %c0_6, %c0_7] : memref<2x12x16x32xf32, #tpu.memory_space<vmem>>, vector<1x1x16x32xf32>
    %5 = vector.shape_cast %4 : vector<1x1x16x32xf32> to vector<16x32xf32>
    %cst = arith.constant dense<0.000000e+00> : vector<16x32xf32>
    %6 = tpu.matmul %3, %5, %cst {dimension_numbers = #tpu.dot_dimension_numbers<[1], [0], [0], [1], [0, 0, 1, 1], [], []>} : vector<16x16xf32>, vector<16x32xf32>, vector<16x32xf32> -> vector<16x32xf32>
    %c0_8 = arith.constant 0 : index
    %c1 = arith.constant 1 : index
    %7 = memref.load %arg1[%c0_8, %c1] : memref<2x12xi32, #tpu.memory_space<smem>>
    %c0_9 = arith.constant 0 : index
    %8 = arith.index_cast %7 : i32 to index
    %c0_10 = arith.constant 0 : index
    %c0_11 = arith.constant 0 : index
    %9 = vector.load %arg2[%c0_9, %8, %c0_10, %c0_11] : memref<2x12x16x16xf32, #tpu.memory_space<vmem>>, vector<1x1x16x16xf32>
    %10 = vector.shape_cast %9 : vector<1x1x16x16xf32> to vector<16x16xf32>
    %c0_12 = arith.constant 0 : index
    %c1_13 = arith.constant 1 : index
    %c0_14 = arith.constant 0 : index
    %c0_15 = arith.constant 0 : index
    %11 = vector.load %arg3[%c0_12, %c1_13, %c0_14, %c0_15] : memref<2x12x16x32xf32, #tpu.memory_space<vmem>>, vector<1x1x16x32xf32>
    %12 = vector.shape_cast %11 : vector<1x1x16x32xf32> to vector<16x32xf32>
    %cst_16 = arith.constant dense<0.000000e+00> : vector<16x32xf32>
    %13 = tpu.matmul %10, %12, %cst_16 {dimension_numbers = #tpu.dot_dimension_numbers<[1], [0], [0], [1], [0, 0, 1, 1], [], []>} : vector<16x16xf32>, vector<16x32xf32>, vector<16x32xf32> -> vector<16x32xf32>
    %c0_17 = arith.constant 0 : index
    %c2 = arith.constant 2 : index
    %14 = memref.load %arg1[%c0_17, %c2] : memref<2x12xi32, #tpu.memory_space<smem>>
    %c0_18 = arith.constant 0 : index
    %15 = arith.index_cast %14 : i32 to index
    %c0_19 = arith.constant 0 : index
    %c0_20 = arith.constant 0 : index
    %16 = vector.load %arg2[%c0_18, %15, %c0_19, %c0_20] : memref<2x12x16x16xf32, #tpu.memory_space<vmem>>, vector<1x1x16x16xf32>
    %17 = vector.shape_cast %16 : vector<1x1x16x16xf32> to vector<16x16xf32>
    %c0_21 = arith.constant 0 : index
    %c2_22 = arith.constant 2 : index
    %c0_23 = arith.constant 0 : index
    %c0_24 = arith.constant 0 : index
    %18 = vector.load %arg3[%c0_21, %c2_22, %c0_23, %c0_24] : memref<2x12x16x32xf32, #tpu.memory_space<vmem>>, vector<1x1x16x32xf32>
    %19 = vector.shape_cast %18 : vector<1x1x16x32xf32> to vector<16x32xf32>
    %cst_25 = arith.constant dense<0.000000e+00> : vector<16x32xf32>
    %20 = tpu.matmul %17, %19, %cst_25 {dimension_numbers = #tpu.dot_dimension_numbers<[1], [0], [0], [1], [0, 0, 1, 1], [], []>} : vector<16x16xf32>, vector<16x32xf32>, vector<16x32xf32> -> vector<16x32xf32>
    %c0_26 = arith.constant 0 : index
    %c3 = arith.constant 3 : index
    %21 = memref.load %arg1[%c0_26, %c3] : memref<2x12xi32, #tpu.memory_space<smem>>
    %c0_27 = arith.constant 0 : index
    %22 = arith.index_cast %21 : i32 to index
    %c0_28 = arith.constant 0 : index
    %c0_29 = arith.constant 0 : index
    %23 = vector.load %arg2[%c0_27, %22, %c0_28, %c0_29] : memref<2x12x16x16xf32, #tpu.memory_space<vmem>>, vector<1x1x16x16xf32>
    %24 = vector.shape_cast %23 : vector<1x1x16x16xf32> to vector<16x16xf32>
    %c0_30 = arith.constant 0 : index
    %c3_31 = arith.constant 3 : index
    %c0_32 = arith.constant 0 : index
    %c0_33 = arith.constant 0 : index
    %25 = vector.load %arg3[%c0_30, %c3_31, %c0_32, %c0_33] : memref<2x12x16x32xf32, #tpu.memory_space<vmem>>, vector<1x1x16x32xf32>
    %26 = vector.shape_cast %25 : vector<1x1x16x32xf32> to vector<16x32xf32>
    %cst_34 = arith.constant dense<0.000000e+00> : vector<16x32xf32>
    %27 = tpu.matmul %24, %26, %cst_34 {dimension_numbers = #tpu.dot_dimension_numbers<[1], [0], [0], [1], [0, 0, 1, 1], [], []>} : vector<16x16xf32>, vector<16x32xf32>, vector<16x32xf32> -> vector<16x32xf32>
    %28 = tpu.concatenate %6, %13, %20, %27 in 1 : vector<16x32xf32>, vector<16x32xf32>, vector<16x32xf32>, vector<16x32xf32> -> vector<16x128xf32>
    %c0_35 = arith.constant 0 : index
    %c0_36 = arith.constant 0 : index
    %c0_37 = arith.constant 0 : index
    %29 = vector.load %arg4[%c0_35, %c0_36, %c0_37] : memref<2x16x384xf32, #tpu.memory_space<vmem>>, vector<1x16x128xf32>
    %30 = vector.shape_cast %29 : vector<1x16x128xf32> to vector<16x128xf32>
    %31 = vector.shape_cast %28 : vector<16x128xf32> to vector<1x16x128xf32>
    tpu.vector_store %arg4[%c0_35, %c0_36, %c0_37], %31 {strides = array<i32>} : memref<2x16x384xf32, #tpu.memory_space<vmem>>, vector<1x16x128xf32>,
    %c0_38 = arith.constant 0 : index
    %c4 = arith.constant 4 : index
    %32 = memref.load %arg1[%c0_38, %c4] : memref<2x12xi32, #tpu.memory_space<smem>>
    %c0_39 = arith.constant 0 : index
    %33 = arith.index_cast %32 : i32 to index
    %c0_40 = arith.constant 0 : index
    %c0_41 = arith.constant 0 : index
    %34 = vector.load %arg2[%c0_39, %33, %c0_40, %c0_41] : memref<2x12x16x16xf32, #tpu.memory_space<vmem>>, vector<1x1x16x16xf32>
    %35 = vector.shape_cast %34 : vector<1x1x16x16xf32> to vector<16x16xf32>
    %c0_42 = arith.constant 0 : index
    %c4_43 = arith.constant 4 : index
    %c0_44 = arith.constant 0 : index
    %c0_45 = arith.constant 0 : index
    %36 = vector.load %arg3[%c0_42, %c4_43, %c0_44, %c0_45] : memref<2x12x16x32xf32, #tpu.memory_space<vmem>>, vector<1x1x16x32xf32>
    %37 = vector.shape_cast %36 : vector<1x1x16x32xf32> to vector<16x32xf32>
    %cst_46 = arith.constant dense<0.000000e+00> : vector<16x32xf32>
    %38 = tpu.matmul %35, %37, %cst_46 {dimension_numbers = #tpu.dot_dimension_numbers<[1], [0], [0], [1], [0, 0, 1, 1], [], []>} : vector<16x16xf32>, vector<16x32xf32>, vector<16x32xf32> -> vector<16x32xf32>
    %c0_47 = arith.constant 0 : index
    %c5 = arith.constant 5 : index
    %39 = memref.load %arg1[%c0_47, %c5] : memref<2x12xi32, #tpu.memory_space<smem>>
    %c0_48 = arith.constant 0 : index
    %40 = arith.index_cast %39 : i32 to index
    %c0_49 = arith.constant 0 : index
    %c0_50 = arith.constant 0 : index
    %41 = vector.load %arg2[%c0_48, %40, %c0_49, %c0_50] : memref<2x12x16x16xf32, #tpu.memory_space<vmem>>, vector<1x1x16x16xf32>
    %42 = vector.shape_cast %41 : vector<1x1x16x16xf32> to vector<16x16xf32>
    %c0_51 = arith.constant 0 : index
    %c5_52 = arith.constant 5 : index
    %c0_53 = arith.constant 0 : index
    %c0_54 = arith.constant 0 : index
    %43 = vector.load %arg3[%c0_51, %c5_52, %c0_53, %c0_54] : memref<2x12x16x32xf32, #tpu.memory_space<vmem>>, vector<1x1x16x32xf32>
    %44 = vector.shape_cast %43 : vector<1x1x16x32xf32> to vector<16x32xf32>
    %cst_55 = arith.constant dense<0.000000e+00> : vector<16x32xf32>
    %45 = tpu.matmul %42, %44, %cst_55 {dimension_numbers = #tpu.dot_dimension_numbers<[1], [0], [0], [1], [0, 0, 1, 1], [], []>} : vector<16x16xf32>, vector<16x32xf32>, vector<16x32xf32> -> vector<16x32xf32>
    %c0_56 = arith.constant 0 : index
    %c6 = arith.constant 6 : index
    %46 = memref.load %arg1[%c0_56, %c6] : memref<2x12xi32, #tpu.memory_space<smem>>
    %c0_57 = arith.constant 0 : index
    %47 = arith.index_cast %46 : i32 to index
    %c0_58 = arith.constant 0 : index
    %c0_59 = arith.constant 0 : index
    %48 = vector.load %arg2[%c0_57, %47, %c0_58, %c0_59] : memref<2x12x16x16xf32, #tpu.memory_space<vmem>>, vector<1x1x16x16xf32>
    %49 = vector.shape_cast %48 : vector<1x1x16x16xf32> to vector<16x16xf32>
    %c0_60 = arith.constant 0 : index
    %c6_61 = arith.constant 6 : index
    %c0_62 = arith.constant 0 : index
    %c0_63 = arith.constant 0 : index
    %50 = vector.load %arg3[%c0_60, %c6_61, %c0_62, %c0_63] : memref<2x12x16x32xf32, #tpu.memory_space<vmem>>, vector<1x1x16x32xf32>
    %51 = vector.shape_cast %50 : vector<1x1x16x32xf32> to vector<16x32xf32>
    %cst_64 = arith.constant dense<0.000000e+00> : vector<16x32xf32>
    %52 = tpu.matmul %49, %51, %cst_64 {dimension_numbers = #tpu.dot_dimension_numbers<[1], [0], [0], [1], [0, 0, 1, 1], [], []>} : vector<16x16xf32>, vector<16x32xf32>, vector<16x32xf32> -> vector<16x32xf32>
    %c0_65 = arith.constant 0 : index
    %c7 = arith.constant 7 : index
    %53 = memref.load %arg1[%c0_65, %c7] : memref<2x12xi32, #tpu.memory_space<smem>>
    %c0_66 = arith.constant 0 : index
    %54 = arith.index_cast %53 : i32 to index
    %c0_67 = arith.constant 0 : index
    %c0_68 = arith.constant 0 : index
    %55 = vector.load %arg2[%c0_66, %54, %c0_67, %c0_68] : memref<2x12x16x16xf32, #tpu.memory_space<vmem>>, vector<1x1x16x16xf32>
    %56 = vector.shape_cast %55 : vector<1x1x16x16xf32> to vector<16x16xf32>
    %c0_69 = arith.constant 0 : index
    %c7_70 = arith.constant 7 : index
    %c0_71 = arith.constant 0 : index
    %c0_72 = arith.constant 0 : index
    %57 = vector.load %arg3[%c0_69, %c7_70, %c0_71, %c0_72] : memref<2x12x16x32xf32, #tpu.memory_space<vmem>>, vector<1x1x16x32xf32>
    %58 = vector.shape_cast %57 : vector<1x1x16x32xf32> to vector<16x32xf32>
    %cst_73 = arith.constant dense<0.000000e+00> : vector<16x32xf32>
    %59 = tpu.matmul %56, %58, %cst_73 {dimension_numbers = #tpu.dot_dimension_numbers<[1], [0], [0], [1], [0, 0, 1, 1], [], []>} : vector<16x16xf32>, vector<16x32xf32>, vector<16x32xf32> -> vector<16x32xf32>
    %60 = tpu.concatenate %38, %45, %52, %59 in 1 : vector<16x32xf32>, vector<16x32xf32>, vector<16x32xf32>, vector<16x32xf32> -> vector<16x128xf32>
    %c0_74 = arith.constant 0 : index
    %c0_75 = arith.constant 0 : index
    %c128 = arith.constant 128 : index
    %61 = vector.load %arg4[%c0_74, %c0_75, %c128] : memref<2x16x384xf32, #tpu.memory_space<vmem>>, vector<1x16x128xf32>
    %62 = vector.shape_cast %61 : vector<1x16x128xf32> to vector<16x128xf32>
    %63 = vector.shape_cast %60 : vector<16x128xf32> to vector<1x16x128xf32>
    tpu.vector_store %arg4[%c0_74, %c0_75, %c128], %63 {strides = array<i32>} : memref<2x16x384xf32, #tpu.memory_space<vmem>>, vector<1x16x128xf32>,
    %c0_76 = arith.constant 0 : index
    %c8 = arith.constant 8 : index
    %64 = memref.load %arg1[%c0_76, %c8] : memref<2x12xi32, #tpu.memory_space<smem>>
    %c0_77 = arith.constant 0 : index
    %65 = arith.index_cast %64 : i32 to index
    %c0_78 = arith.constant 0 : index
    %c0_79 = arith.constant 0 : index
    %66 = vector.load %arg2[%c0_77, %65, %c0_78, %c0_79] : memref<2x12x16x16xf32, #tpu.memory_space<vmem>>, vector<1x1x16x16xf32>
    %67 = vector.shape_cast %66 : vector<1x1x16x16xf32> to vector<16x16xf32>
    %c0_80 = arith.constant 0 : index
    %c8_81 = arith.constant 8 : index
    %c0_82 = arith.constant 0 : index
    %c0_83 = arith.constant 0 : index
    %68 = vector.load %arg3[%c0_80, %c8_81, %c0_82, %c0_83] : memref<2x12x16x32xf32, #tpu.memory_space<vmem>>, vector<1x1x16x32xf32>
    %69 = vector.shape_cast %68 : vector<1x1x16x32xf32> to vector<16x32xf32>
    %cst_84 = arith.constant dense<0.000000e+00> : vector<16x32xf32>
    %70 = tpu.matmul %67, %69, %cst_84 {dimension_numbers = #tpu.dot_dimension_numbers<[1], [0], [0], [1], [0, 0, 1, 1], [], []>} : vector<16x16xf32>, vector<16x32xf32>, vector<16x32xf32> -> vector<16x32xf32>
    %c0_85 = arith.constant 0 : index
    %c9 = arith.constant 9 : index
    %71 = memref.load %arg1[%c0_85, %c9] : memref<2x12xi32, #tpu.memory_space<smem>>
    %c0_86 = arith.constant 0 : index
    %72 = arith.index_cast %71 : i32 to index
    %c0_87 = arith.constant 0 : index
    %c0_88 = arith.constant 0 : index
    %73 = vector.load %arg2[%c0_86, %72, %c0_87, %c0_88] : memref<2x12x16x16xf32, #tpu.memory_space<vmem>>, vector<1x1x16x16xf32>
    %74 = vector.shape_cast %73 : vector<1x1x16x16xf32> to vector<16x16xf32>
    %c0_89 = arith.constant 0 : index
    %c9_90 = arith.constant 9 : index
    %c0_91 = arith.constant 0 : index
    %c0_92 = arith.constant 0 : index
    %75 = vector.load %arg3[%c0_89, %c9_90, %c0_91, %c0_92] : memref<2x12x16x32xf32, #tpu.memory_space<vmem>>, vector<1x1x16x32xf32>
    %76 = vector.shape_cast %75 : vector<1x1x16x32xf32> to vector<16x32xf32>
    %cst_93 = arith.constant dense<0.000000e+00> : vector<16x32xf32>
    %77 = tpu.matmul %74, %76, %cst_93 {dimension_numbers = #tpu.dot_dimension_numbers<[1], [0], [0], [1], [0, 0, 1, 1], [], []>} : vector<16x16xf32>, vector<16x32xf32>, vector<16x32xf32> -> vector<16x32xf32>
    %c0_94 = arith.constant 0 : index
    %c10 = arith.constant 10 : index
    %78 = memref.load %arg1[%c0_94, %c10] : memref<2x12xi32, #tpu.memory_space<smem>>
    %c0_95 = arith.constant 0 : index
    %79 = arith.index_cast %78 : i32 to index
    %c0_96 = arith.constant 0 : index
    %c0_97 = arith.constant 0 : index
    %80 = vector.load %arg2[%c0_95, %79, %c0_96, %c0_97] : memref<2x12x16x16xf32, #tpu.memory_space<vmem>>, vector<1x1x16x16xf32>
    %81 = vector.shape_cast %80 : vector<1x1x16x16xf32> to vector<16x16xf32>
    %c0_98 = arith.constant 0 : index
    %c10_99 = arith.constant 10 : index
    %c0_100 = arith.constant 0 : index
    %c0_101 = arith.constant 0 : index
    %82 = vector.load %arg3[%c0_98, %c10_99, %c0_100, %c0_101] : memref<2x12x16x32xf32, #tpu.memory_space<vmem>>, vector<1x1x16x32xf32>
    %83 = vector.shape_cast %82 : vector<1x1x16x32xf32> to vector<16x32xf32>
    %cst_102 = arith.constant dense<0.000000e+00> : vector<16x32xf32>
    %84 = tpu.matmul %81, %83, %cst_102 {dimension_numbers = #tpu.dot_dimension_numbers<[1], [0], [0], [1], [0, 0, 1, 1], [], []>} : vector<16x16xf32>, vector<16x32xf32>, vector<16x32xf32> -> vector<16x32xf32>
    %c0_103 = arith.constant 0 : index
    %c11 = arith.constant 11 : index
    %85 = memref.load %arg1[%c0_103, %c11] : memref<2x12xi32, #tpu.memory_space<smem>>
    %c0_104 = arith.constant 0 : index
    %86 = arith.index_cast %85 : i32 to index
    %c0_105 = arith.constant 0 : index
    %c0_106 = arith.constant 0 : index
    %87 = vector.load %arg2[%c0_104, %86, %c0_105, %c0_106] : memref<2x12x16x16xf32, #tpu.memory_space<vmem>>, vector<1x1x16x16xf32>
    %88 = vector.shape_cast %87 : vector<1x1x16x16xf32> to vector<16x16xf32>
    %c0_107 = arith.constant 0 : index
    %c11_108 = arith.constant 11 : index
    %c0_109 = arith.constant 0 : index
    %c0_110 = arith.constant 0 : index
    %89 = vector.load %arg3[%c0_107, %c11_108, %c0_109, %c0_110] : memref<2x12x16x32xf32, #tpu.memory_space<vmem>>, vector<1x1x16x32xf32>
    %90 = vector.shape_cast %89 : vector<1x1x16x32xf32> to vector<16x32xf32>
    %cst_111 = arith.constant dense<0.000000e+00> : vector<16x32xf32>
    %91 = tpu.matmul %88, %90, %cst_111 {dimension_numbers = #tpu.dot_dimension_numbers<[1], [0], [0], [1], [0, 0, 1, 1], [], []>} : vector<16x16xf32>, vector<16x32xf32>, vector<16x32xf32> -> vector<16x32xf32>
    %92 = tpu.concatenate %70, %77, %84, %91 in 1 : vector<16x32xf32>, vector<16x32xf32>, vector<16x32xf32>, vector<16x32xf32> -> vector<16x128xf32>
    %c0_112 = arith.constant 0 : index
    %c0_113 = arith.constant 0 : index
    %c256 = arith.constant 256 : index
    %93 = vector.load %arg4[%c0_112, %c0_113, %c256] : memref<2x16x384xf32, #tpu.memory_space<vmem>>, vector<1x16x128xf32>
    %94 = vector.shape_cast %93 : vector<1x16x128xf32> to vector<16x128xf32>
    %95 = vector.shape_cast %92 : vector<16x128xf32> to vector<1x16x128xf32>
    tpu.vector_store %arg4[%c0_112, %c0_113, %c256], %95 {strides = array<i32>} : memref<2x16x384xf32, #tpu.memory_space<vmem>>, vector<1x16x128xf32>,
    %c1_114 = arith.constant 1 : index
    %c0_115 = arith.constant 0 : index
    %96 = memref.load %arg1[%c1_114, %c0_115] : memref<2x12xi32, #tpu.memory_space<smem>>
    %c1_116 = arith.constant 1 : index
    %97 = arith.index_cast %96 : i32 to index
    %c0_117 = arith.constant 0 : index
    %c0_118 = arith.constant 0 : index
    %98 = vector.load %arg2[%c1_116, %97, %c0_117, %c0_118] : memref<2x12x16x16xf32, #tpu.memory_space<vmem>>, vector<1x1x16x16xf32>
    %99 = vector.shape_cast %98 : vector<1x1x16x16xf32> to vector<16x16xf32>
    %c1_119 = arith.constant 1 : index
    %c0_120 = arith.constant 0 : index
    %c0_121 = arith.constant 0 : index
    %c0_122 = arith.constant 0 : index
    %100 = vector.load %arg3[%c1_119, %c0_120, %c0_121, %c0_122] : memref<2x12x16x32xf32, #tpu.memory_space<vmem>>, vector<1x1x16x32xf32>
    %101 = vector.shape_cast %100 : vector<1x1x16x32xf32> to vector<16x32xf32>
    %cst_123 = arith.constant dense<0.000000e+00> : vector<16x32xf32>
    %102 = tpu.matmul %99, %101, %cst_123 {dimension_numbers = #tpu.dot_dimension_numbers<[1], [0], [0], [1], [0, 0, 1, 1], [], []>} : vector<16x16xf32>, vector<16x32xf32>, vector<16x32xf32> -> vector<16x32xf32>
    %c1_124 = arith.constant 1 : index
    %c1_125 = arith.constant 1 : index
    %103 = memref.load %arg1[%c1_124, %c1_125] : memref<2x12xi32, #tpu.memory_space<smem>>
    %c1_126 = arith.constant 1 : index
    %104 = arith.index_cast %103 : i32 to index
    %c0_127 = arith.constant 0 : index
    %c0_128 = arith.constant 0 : index
    %105 = vector.load %arg2[%c1_126, %104, %c0_127, %c0_128] : memref<2x12x16x16xf32, #tpu.memory_space<vmem>>, vector<1x1x16x16xf32>
    %106 = vector.shape_cast %105 : vector<1x1x16x16xf32> to vector<16x16xf32>
    %c1_129 = arith.constant 1 : index
    %c1_130 = arith.constant 1 : index
    %c0_131 = arith.constant 0 : index
    %c0_132 = arith.constant 0 : index
    %107 = vector.load %arg3[%c1_129, %c1_130, %c0_131, %c0_132] : memref<2x12x16x32xf32, #tpu.memory_space<vmem>>, vector<1x1x16x32xf32>
    %108 = vector.shape_cast %107 : vector<1x1x16x32xf32> to vector<16x32xf32>
    %cst_133 = arith.constant dense<0.000000e+00> : vector<16x32xf32>
    %109 = tpu.matmul %106, %108, %cst_133 {dimension_numbers = #tpu.dot_dimension_numbers<[1], [0], [0], [1], [0, 0, 1, 1], [], []>} : vector<16x16xf32>, vector<16x32xf32>, vector<16x32xf32> -> vector<16x32xf32>
    %c1_134 = arith.constant 1 : index
    %c2_135 = arith.constant 2 : index
    %110 = memref.load %arg1[%c1_134, %c2_135] : memref<2x12xi32, #tpu.memory_space<smem>>
    %c1_136 = arith.constant 1 : index
    %111 = arith.index_cast %110 : i32 to index
    %c0_137 = arith.constant 0 : index
    %c0_138 = arith.constant 0 : index
    %112 = vector.load %arg2[%c1_136, %111, %c0_137, %c0_138] : memref<2x12x16x16xf32, #tpu.memory_space<vmem>>, vector<1x1x16x16xf32>
    %113 = vector.shape_cast %112 : vector<1x1x16x16xf32> to vector<16x16xf32>
    %c1_139 = arith.constant 1 : index
    %c2_140 = arith.constant 2 : index
    %c0_141 = arith.constant 0 : index
    %c0_142 = arith.constant 0 : index
    %114 = vector.load %arg3[%c1_139, %c2_140, %c0_141, %c0_142] : memref<2x12x16x32xf32, #tpu.memory_space<vmem>>, vector<1x1x16x32xf32>
    %115 = vector.shape_cast %114 : vector<1x1x16x32xf32> to vector<16x32xf32>
    %cst_143 = arith.constant dense<0.000000e+00> : vector<16x32xf32>
    %116 = tpu.matmul %113, %115, %cst_143 {dimension_numbers = #tpu.dot_dimension_numbers<[1], [0], [0], [1], [0, 0, 1, 1], [], []>} : vector<16x16xf32>, vector<16x32xf32>, vector<16x32xf32> -> vector<16x32xf32>
    %c1_144 = arith.constant 1 : index
    %c3_145 = arith.constant 3 : index
    %117 = memref.load %arg1[%c1_144, %c3_145] : memref<2x12xi32, #tpu.memory_space<smem>>
    %c1_146 = arith.constant 1 : index
    %118 = arith.index_cast %117 : i32 to index
    %c0_147 = arith.constant 0 : index
    %c0_148 = arith.constant 0 : index
    %119 = vector.load %arg2[%c1_146, %118, %c0_147, %c0_148] : memref<2x12x16x16xf32, #tpu.memory_space<vmem>>, vector<1x1x16x16xf32>
    %120 = vector.shape_cast %119 : vector<1x1x16x16xf32> to vector<16x16xf32>
    %c1_149 = arith.constant 1 : index
    %c3_150 = arith.constant 3 : index
    %c0_151 = arith.constant 0 : index
    %c0_152 = arith.constant 0 : index
    %121 = vector.load %arg3[%c1_149, %c3_150, %c0_151, %c0_152] : memref<2x12x16x32xf32, #tpu.memory_space<vmem>>, vector<1x1x16x32xf32>
    %122 = vector.shape_cast %121 : vector<1x1x16x32xf32> to vector<16x32xf32>
    %cst_153 = arith.constant dense<0.000000e+00> : vector<16x32xf32>
    %123 = tpu.matmul %120, %122, %cst_153 {dimension_numbers = #tpu.dot_dimension_numbers<[1], [0], [0], [1], [0, 0, 1, 1], [], []>} : vector<16x16xf32>, vector<16x32xf32>, vector<16x32xf32> -> vector<16x32xf32>
    %124 = tpu.concatenate %102, %109, %116, %123 in 1 : vector<16x32xf32>, vector<16x32xf32>, vector<16x32xf32>, vector<16x32xf32> -> vector<16x128xf32>
    %c1_154 = arith.constant 1 : index
    %c0_155 = arith.constant 0 : index
    %c0_156 = arith.constant 0 : index
    %125 = vector.load %arg4[%c1_154, %c0_155, %c0_156] : memref<2x16x384xf32, #tpu.memory_space<vmem>>, vector<1x16x128xf32>
    %126 = vector.shape_cast %125 : vector<1x16x128xf32> to vector<16x128xf32>
    %127 = vector.shape_cast %124 : vector<16x128xf32> to vector<1x16x128xf32>
    tpu.vector_store %arg4[%c1_154, %c0_155, %c0_156], %127 {strides = array<i32>} : memref<2x16x384xf32, #tpu.memory_space<vmem>>, vector<1x16x128xf32>,
    %c1_157 = arith.constant 1 : index
    %c4_158 = arith.constant 4 : index
    %128 = memref.load %arg1[%c1_157, %c4_158] : memref<2x12xi32, #tpu.memory_space<smem>>
    %c1_159 = arith.constant 1 : index
    %129 = arith.index_cast %128 : i32 to index
    %c0_160 = arith.constant 0 : index
    %c0_161 = arith.constant 0 : index
    %130 = vector.load %arg2[%c1_159, %129, %c0_160, %c0_161] : memref<2x12x16x16xf32, #tpu.memory_space<vmem>>, vector<1x1x16x16xf32>
    %131 = vector.shape_cast %130 : vector<1x1x16x16xf32> to vector<16x16xf32>
    %c1_162 = arith.constant 1 : index
    %c4_163 = arith.constant 4 : index
    %c0_164 = arith.constant 0 : index
    %c0_165 = arith.constant 0 : index
    %132 = vector.load %arg3[%c1_162, %c4_163, %c0_164, %c0_165] : memref<2x12x16x32xf32, #tpu.memory_space<vmem>>, vector<1x1x16x32xf32>
    %133 = vector.shape_cast %132 : vector<1x1x16x32xf32> to vector<16x32xf32>
    %cst_166 = arith.constant dense<0.000000e+00> : vector<16x32xf32>
    %134 = tpu.matmul %131, %133, %cst_166 {dimension_numbers = #tpu.dot_dimension_numbers<[1], [0], [0], [1], [0, 0, 1, 1], [], []>} : vector<16x16xf32>, vector<16x32xf32>, vector<16x32xf32> -> vector<16x32xf32>
    %c1_167 = arith.constant 1 : index
    %c5_168 = arith.constant 5 : index
    %135 = memref.load %arg1[%c1_167, %c5_168] : memref<2x12xi32, #tpu.memory_space<smem>>
    %c1_169 = arith.constant 1 : index
    %136 = arith.index_cast %135 : i32 to index
    %c0_170 = arith.constant 0 : index
    %c0_171 = arith.constant 0 : index
    %137 = vector.load %arg2[%c1_169, %136, %c0_170, %c0_171] : memref<2x12x16x16xf32, #tpu.memory_space<vmem>>, vector<1x1x16x16xf32>
    %138 = vector.shape_cast %137 : vector<1x1x16x16xf32> to vector<16x16xf32>
    %c1_172 = arith.constant 1 : index
    %c5_173 = arith.constant 5 : index
    %c0_174 = arith.constant 0 : index
    %c0_175 = arith.constant 0 : index
    %139 = vector.load %arg3[%c1_172, %c5_173, %c0_174, %c0_175] : memref<2x12x16x32xf32, #tpu.memory_space<vmem>>, vector<1x1x16x32xf32>
    %140 = vector.shape_cast %139 : vector<1x1x16x32xf32> to vector<16x32xf32>
    %cst_176 = arith.constant dense<0.000000e+00> : vector<16x32xf32>
    %141 = tpu.matmul %138, %140, %cst_176 {dimension_numbers = #tpu.dot_dimension_numbers<[1], [0], [0], [1], [0, 0, 1, 1], [], []>} : vector<16x16xf32>, vector<16x32xf32>, vector<16x32xf32> -> vector<16x32xf32>
    %c1_177 = arith.constant 1 : index
    %c6_178 = arith.constant 6 : index
    %142 = memref.load %arg1[%c1_177, %c6_178] : memref<2x12xi32, #tpu.memory_space<smem>>
    %c1_179 = arith.constant 1 : index
    %143 = arith.index_cast %142 : i32 to index
    %c0_180 = arith.constant 0 : index
    %c0_181 = arith.constant 0 : index
    %144 = vector.load %arg2[%c1_179, %143, %c0_180, %c0_181] : memref<2x12x16x16xf32, #tpu.memory_space<vmem>>, vector<1x1x16x16xf32>
    %145 = vector.shape_cast %144 : vector<1x1x16x16xf32> to vector<16x16xf32>
    %c1_182 = arith.constant 1 : index
    %c6_183 = arith.constant 6 : index
    %c0_184 = arith.constant 0 : index
    %c0_185 = arith.constant 0 : index
    %146 = vector.load %arg3[%c1_182, %c6_183, %c0_184, %c0_185] : memref<2x12x16x32xf32, #tpu.memory_space<vmem>>, vector<1x1x16x32xf32>
    %147 = vector.shape_cast %146 : vector<1x1x16x32xf32> to vector<16x32xf32>
    %cst_186 = arith.constant dense<0.000000e+00> : vector<16x32xf32>
    %148 = tpu.matmul %145, %147, %cst_186 {dimension_numbers = #tpu.dot_dimension_numbers<[1], [0], [0], [1], [0, 0, 1, 1], [], []>} : vector<16x16xf32>, vector<16x32xf32>, vector<16x32xf32> -> vector<16x32xf32>
    %c1_187 = arith.constant 1 : index
    %c7_188 = arith.constant 7 : index
    %149 = memref.load %arg1[%c1_187, %c7_188] : memref<2x12xi32, #tpu.memory_space<smem>>
    %c1_189 = arith.constant 1 : index
    %150 = arith.index_cast %149 : i32 to index
    %c0_190 = arith.constant 0 : index
    %c0_191 = arith.constant 0 : index
    %151 = vector.load %arg2[%c1_189, %150, %c0_190, %c0_191] : memref<2x12x16x16xf32, #tpu.memory_space<vmem>>, vector<1x1x16x16xf32>
    %152 = vector.shape_cast %151 : vector<1x1x16x16xf32> to vector<16x16xf32>
    %c1_192 = arith.constant 1 : index
    %c7_193 = arith.constant 7 : index
    %c0_194 = arith.constant 0 : index
    %c0_195 = arith.constant 0 : index
    %153 = vector.load %arg3[%c1_192, %c7_193, %c0_194, %c0_195] : memref<2x12x16x32xf32, #tpu.memory_space<vmem>>, vector<1x1x16x32xf32>
    %154 = vector.shape_cast %153 : vector<1x1x16x32xf32> to vector<16x32xf32>
    %cst_196 = arith.constant dense<0.000000e+00> : vector<16x32xf32>
    %155 = tpu.matmul %152, %154, %cst_196 {dimension_numbers = #tpu.dot_dimension_numbers<[1], [0], [0], [1], [0, 0, 1, 1], [], []>} : vector<16x16xf32>, vector<16x32xf32>, vector<16x32xf32> -> vector<16x32xf32>
    %156 = tpu.concatenate %134, %141, %148, %155 in 1 : vector<16x32xf32>, vector<16x32xf32>, vector<16x32xf32>, vector<16x32xf32> -> vector<16x128xf32>
    %c1_197 = arith.constant 1 : index
    %c0_198 = arith.constant 0 : index
    %c128_199 = arith.constant 128 : index
    %157 = vector.load %arg4[%c1_197, %c0_198, %c128_199] : memref<2x16x384xf32, #tpu.memory_space<vmem>>, vector<1x16x128xf32>
    %158 = vector.shape_cast %157 : vector<1x16x128xf32> to vector<16x128xf32>
    %159 = vector.shape_cast %156 : vector<16x128xf32> to vector<1x16x128xf32>
    tpu.vector_store %arg4[%c1_197, %c0_198, %c128_199], %159 {strides = array<i32>} : memref<2x16x384xf32, #tpu.memory_space<vmem>>, vector<1x16x128xf32>,
    %c1_200 = arith.constant 1 : index
    %c8_201 = arith.constant 8 : index
    %160 = memref.load %arg1[%c1_200, %c8_201] : memref<2x12xi32, #tpu.memory_space<smem>>
    %c1_202 = arith.constant 1 : index
    %161 = arith.index_cast %160 : i32 to index
    %c0_203 = arith.constant 0 : index
    %c0_204 = arith.constant 0 : index
    %162 = vector.load %arg2[%c1_202, %161, %c0_203, %c0_204] : memref<2x12x16x16xf32, #tpu.memory_space<vmem>>, vector<1x1x16x16xf32>
    %163 = vector.shape_cast %162 : vector<1x1x16x16xf32> to vector<16x16xf32>
    %c1_205 = arith.constant 1 : index
    %c8_206 = arith.constant 8 : index
    %c0_207 = arith.constant 0 : index
    %c0_208 = arith.constant 0 : index
    %164 = vector.load %arg3[%c1_205, %c8_206, %c0_207, %c0_208] : memref<2x12x16x32xf32, #tpu.memory_space<vmem>>, vector<1x1x16x32xf32>
    %165 = vector.shape_cast %164 : vector<1x1x16x32xf32> to vector<16x32xf32>
    %cst_209 = arith.constant dense<0.000000e+00> : vector<16x32xf32>
    %166 = tpu.matmul %163, %165, %cst_209 {dimension_numbers = #tpu.dot_dimension_numbers<[1], [0], [0], [1], [0, 0, 1, 1], [], []>} : vector<16x16xf32>, vector<16x32xf32>, vector<16x32xf32> -> vector<16x32xf32>
    %c1_210 = arith.constant 1 : index
    %c9_211 = arith.constant 9 : index
    %167 = memref.load %arg1[%c1_210, %c9_211] : memref<2x12xi32, #tpu.memory_space<smem>>
    %c1_212 = arith.constant 1 : index
    %168 = arith.index_cast %167 : i32 to index
    %c0_213 = arith.constant 0 : index
    %c0_214 = arith.constant 0 : index
    %169 = vector.load %arg2[%c1_212, %168, %c0_213, %c0_214] : memref<2x12x16x16xf32, #tpu.memory_space<vmem>>, vector<1x1x16x16xf32>
    %170 = vector.shape_cast %169 : vector<1x1x16x16xf32> to vector<16x16xf32>
    %c1_215 = arith.constant 1 : index
    %c9_216 = arith.constant 9 : index
    %c0_217 = arith.constant 0 : index
    %c0_218 = arith.constant 0 : index
    %171 = vector.load %arg3[%c1_215, %c9_216, %c0_217, %c0_218] : memref<2x12x16x32xf32, #tpu.memory_space<vmem>>, vector<1x1x16x32xf32>
    %172 = vector.shape_cast %171 : vector<1x1x16x32xf32> to vector<16x32xf32>
    %cst_219 = arith.constant dense<0.000000e+00> : vector<16x32xf32>
    %173 = tpu.matmul %170, %172, %cst_219 {dimension_numbers = #tpu.dot_dimension_numbers<[1], [0], [0], [1], [0, 0, 1, 1], [], []>} : vector<16x16xf32>, vector<16x32xf32>, vector<16x32xf32> -> vector<16x32xf32>
    %c1_220 = arith.constant 1 : index
    %c10_221 = arith.constant 10 : index
    %174 = memref.load %arg1[%c1_220, %c10_221] : memref<2x12xi32, #tpu.memory_space<smem>>
    %c1_222 = arith.constant 1 : index
    %175 = arith.index_cast %174 : i32 to index
    %c0_223 = arith.constant 0 : index
    %c0_224 = arith.constant 0 : index
    %176 = vector.load %arg2[%c1_222, %175, %c0_223, %c0_224] : memref<2x12x16x16xf32, #tpu.memory_space<vmem>>, vector<1x1x16x16xf32>
    %177 = vector.shape_cast %176 : vector<1x1x16x16xf32> to vector<16x16xf32>
    %c1_225 = arith.constant 1 : index
    %c10_226 = arith.constant 10 : index
    %c0_227 = arith.constant 0 : index
    %c0_228 = arith.constant 0 : index
    %178 = vector.load %arg3[%c1_225, %c10_226, %c0_227, %c0_228] : memref<2x12x16x32xf32, #tpu.memory_space<vmem>>, vector<1x1x16x32xf32>
    %179 = vector.shape_cast %178 : vector<1x1x16x32xf32> to vector<16x32xf32>
    %cst_229 = arith.constant dense<0.000000e+00> : vector<16x32xf32>
    %180 = tpu.matmul %177, %179, %cst_229 {dimension_numbers = #tpu.dot_dimension_numbers<[1], [0], [0], [1], [0, 0, 1, 1], [], []>} : vector<16x16xf32>, vector<16x32xf32>, vector<16x32xf32> -> vector<16x32xf32>
    %c1_230 = arith.constant 1 : index
    %c11_231 = arith.constant 11 : index
    %181 = memref.load %arg1[%c1_230, %c11_231] : memref<2x12xi32, #tpu.memory_space<smem>>
    %c1_232 = arith.constant 1 : index
    %182 = arith.index_cast %181 : i32 to index
    %c0_233 = arith.constant 0 : index
    %c0_234 = arith.constant 0 : index
    %183 = vector.load %arg2[%c1_232, %182, %c0_233, %c0_234] : memref<2x12x16x16xf32, #tpu.memory_space<vmem>>, vector<1x1x16x16xf32>
    %184 = vector.shape_cast %183 : vector<1x1x16x16xf32> to vector<16x16xf32>
    %c1_235 = arith.constant 1 : index
    %c11_236 = arith.constant 11 : index
    %c0_237 = arith.constant 0 : index
    %c0_238 = arith.constant 0 : index
    %185 = vector.load %arg3[%c1_235, %c11_236, %c0_237, %c0_238] : memref<2x12x16x32xf32, #tpu.memory_space<vmem>>, vector<1x1x16x32xf32>
    %186 = vector.shape_cast %185 : vector<1x1x16x32xf32> to vector<16x32xf32>
    %cst_239 = arith.constant dense<0.000000e+00> : vector<16x32xf32>
    %187 = tpu.matmul %184, %186, %cst_239 {dimension_numbers = #tpu.dot_dimension_numbers<[1], [0], [0], [1], [0, 0, 1, 1], [], []>} : vector<16x16xf32>, vector<16x32xf32>, vector<16x32xf32> -> vector<16x32xf32>
    %188 = tpu.concatenate %166, %173, %180, %187 in 1 : vector<16x32xf32>, vector<16x32xf32>, vector<16x32xf32>, vector<16x32xf32> -> vector<16x128xf32>
    %c1_240 = arith.constant 1 : index
    %c0_241 = arith.constant 0 : index
    %c256_242 = arith.constant 256 : index
    %189 = vector.load %arg4[%c1_240, %c0_241, %c256_242] : memref<2x16x384xf32, #tpu.memory_space<vmem>>, vector<1x16x128xf32>
    %190 = vector.shape_cast %189 : vector<1x16x128xf32> to vector<16x128xf32>
    %191 = vector.shape_cast %188 : vector<16x128xf32> to vector<1x16x128xf32>
    tpu.vector_store %arg4[%c1_240, %c0_241, %c256_242], %191 {strides = array<i32>} : memref<2x16x384xf32, #tpu.memory_space<vmem>>, vector<1x16x128xf32>,
    return
  }
  func.func @transform_0(%arg0: i32, %arg1: memref<2x12xi32, #tpu.memory_space<smem>>) -> (i32, i32, i32, i32) {
    %c0_i32 = arith.constant 0 : i32
    %c0_i32_0 = arith.constant 0 : i32
    %c0_i32_1 = arith.constant 0 : i32
    %c0_i32_2 = arith.constant 0 : i32
    %c0_i32_3 = arith.constant 0 : i32
    return %c0_i32, %c0_i32_0, %c0_i32_1, %c0_i32_2 : i32, i32, i32, i32
  }
  func.func @transform_1(%arg0: i32, %arg1: memref<2x12xi32, #tpu.memory_space<smem>>) -> (i32, i32, i32, i32) {
    %c0_i32 = arith.constant 0 : i32
    %c0_i32_0 = arith.constant 0 : i32
    %c0_i32_1 = arith.constant 0 : i32
    %c0_i32_2 = arith.constant 0 : i32
    %c0_i32_3 = arith.constant 0 : i32
    return %c0_i32, %c0_i32_0, %c0_i32_1, %c0_i32_2 : i32, i32, i32, i32
  }
  func.func @transform_2(%arg0: i32, %arg1: memref<2x12xi32, #tpu.memory_space<smem>>) -> (i32, i32, i32) {
    %c0_i32 = arith.constant 0 : i32
    %c0_i32_0 = arith.constant 0 : i32
    %c0_i32_1 = arith.constant 0 : i32
    %c0_i32_2 = arith.constant 0 : i32
    return %c0_i32, %c0_i32_0, %c0_i32_1 : i32, i32, i32
  }
}

</mosaic_0001>

<llo_original>
// kernel: tpu_custom_call.1
$region0: #{tpu_custom_call.1}
  #allocation0 [shape = 'u32[]', space=smem, size = 0x4, offset = 0x4, fixed_abs, tag = 'smem constant byte address 0x4 - core index']
  #allocation1 [shape = 'u32[144,128]{1,0:T(1,128)}', space=vmem, size = 0x12000, scoped, tag = 'internal scratch']
  #allocation2 [shape = 's32[1]{0}', space=sflag, size = 0x4, scoped, tag = 'scoped memory for tpu_custom_call.1']
  #allocation3 [shape = 'u8[1024]{0}', space=smem, size = 0x400, scoped, tag = 'prefetched SMEM operand 0']
  %s0 = inlined_call_operand.hbm [shape: s32[2,12], index: 0, kind: input, shape index: {}]
  %s1 = inlined_call_operand.hbm [shape: f32[2,12,16,16], index: 1, kind: input, shape index: {}]
  %s2 = inlined_call_operand.hbm [shape: f32[2,12,16,32], index: 2, kind: input, shape index: {}]
  %s3 = inlined_call_operand.hbm [shape: f32[2,16,384], index: 3, kind: output, shape index: {}]
  %s4 = sld [smem:[#allocation0]]
  $region26: #{tpu_custom_call.1} parent=0
    _
  %s6 = ssub.s32 1, %s4
  %s7 = scalar_select 0, %s6, %s4
  %9 = dma.hbm_to_smem %s0, 32, [#allocation3], [#allocation2]
  %10 = dma.done [#allocation2], 32
  %11 = sfence
  $region1: #{tpu_custom_call.1} parent=0
    #allocation4 [shape = 'u8[196608]{0}', space=vmem, size = 0x30000, scoped, tag = 'input window, operand 1, single buffered']
    #allocation5 [shape = 's32[1]{0}', space=sflag, size = 0x4, scoped, tag = 'scoped memory for tpu_custom_call.1']
    #allocation6 [shape = 's32[1]{0}', space=sflag, size = 0x4, scoped, tag = 'scoped memory for tpu_custom_call.1']
    #allocation7 [shape = 'u8[196608]{0}', space=vmem, size = 0x30000, scoped, tag = 'input window, operand 2, single buffered']
    #allocation8 [shape = 's32[1]{0}', space=sflag, size = 0x4, scoped, tag = 'scoped memory for tpu_custom_call.1']
    #allocation9 [shape = 'u8[49152]{0}', space=vmem, size = 0xc000, scoped, tag = 'output window, operand 0, single buffered']
    %12 = vsyncpa [#allocation5], 0
    %13 = vsyncpa [#allocation8], 0
    %14 = vsyncpa [#allocation6], 0
    // Predicated region
    $region2: #{tpu_custom_call.1} parent=1 // pred_check
      _
    $region3: #{tpu_custom_call.1} parent=1 // pred_check_branch
      %16 = sbr.rel (0) target = $region5
    $region4: #{tpu_custom_call.1} parent=1 // pred_region
      %s18 = ssub.s32 6144, 6144
      %19 = vsyncadd [#allocation5], %s18
      %s20 = sshll.u32 [#allocation4], 4
      %s21 = int_to_ptr.vmem [resolvable:$true] %s20
      %26 = dma.hbm_to_vmem [thread:$0]  %s1, 6144, %s21, [#allocation5], 128, 128, 8
    $region5: #{tpu_custom_call.1} parent=1 // pred_fallthru
      _
    // Predicated region
    $region6: #{tpu_custom_call.1} parent=1 // pred_check
      _
    $region7: #{tpu_custom_call.1} parent=1 // pred_check_branch
      %28 = sbr.rel (0) target = $region9
    $region8: #{tpu_custom_call.1} parent=1 // pred_region
      %s30 = ssub.s32 6144, 6144
      %31 = vsyncadd [#allocation8], %s30
      %s32 = sshll.u32 [#allocation7], 4
      %s33 = int_to_ptr.vmem [resolvable:$true] %s32
      %38 = dma.hbm_to_vmem [thread:$0]  %s2, 6144, %s33, [#allocation8], 128, 128, 8
    $region9: #{tpu_custom_call.1} parent=1 // pred_fallthru
      _
    // Predicated region
    $region10: #{tpu_custom_call.1} parent=1 // pred_check
      _
    $region11: #{tpu_custom_call.1} parent=1 // pred_check_branch
      %40 = sbr.rel (0) target = $region13
    $region12: #{tpu_custom_call.1} parent=1 // pred_region
      %41 = dma.done [#allocation5], 6144
    $region13: #{tpu_custom_call.1} parent=1 // pred_fallthru
      _
    // Predicated region
    $region14: #{tpu_custom_call.1} parent=1 // pred_check
      _
    $region15: #{tpu_custom_call.1} parent=1 // pred_check_branch
      %43 = sbr.rel (0) target = $region17
    $region16: #{tpu_custom_call.1} parent=1 // pred_region
      %44 = dma.done [#allocation8], 6144
    $region17: #{tpu_custom_call.1} parent=1 // pred_fallthru
      _
    %s45 = sld [smem:[#allocation3]]
    %s46 = smul.u32 %s45, 16
    %s47 = scalar_lea.vmem [#allocation4], %s46
    %v48 = vld [vmem:[%s47] sm:$0xff]
    %v49 = vld [vmem:[%s47 + $0x8] sm:$0xff]
    %v50 = vld [vmem:[#allocation7] sm:$0xff]
    %v51 = vld [vmem:[#allocation7 + $0x8] sm:$0xff]
    %vm52 = vcmask 130048
    %v54 = vsel %vm52, %v48, 0
    %v57 = vsel %vm52, %v49, 0
    %59 = vmatprep.subr.mxu0 0.0
    %60 = vmatpush1.msra.mxu0 0.0
    %61 = vmatprep.subr.mxu0 0.0
    %62 = vmatpush1.msra.mxu0 0.0
    %63 = vmatprep.subr.mxu0 0.0
    %64 = vmatpush1.msra.mxu0 0.0
    %65 = vmatprep.subr.mxu0 0.0
    %66 = vmatpush1.msra.mxu0 0.0
    %67 = vmatprep.subr.mxu0 0.0
    %68 = vmatpush1.msra.mxu0 0.0
    %69 = vmatprep.subr.mxu0 0.0
    %70 = vmatpush1.msra.mxu0 0.0
    %71 = vmatprep.subr.mxu0 0.0
    %72 = vmatpush1.msra.mxu0 0.0
    %73 = vmatprep.subr.mxu0 0.0
    %74 = vmatpush1.msra.mxu0 0.0
    %75 = vmatprep.subr.mxu0 0.0
    %76 = vmatpush1.msra.mxu0 0.0
    %77 = vmatprep.subr.mxu0 0.0
    %78 = vmatpush1.msra.mxu0 0.0
    %79 = vmatprep.subr.mxu0 0.0
    %80 = vmatpush1.msra.mxu0 0.0
    %81 = vmatprep.subr.mxu0 0.0
    %82 = vmatpush1.msra.mxu0 0.0
    %83 = vmatprep.subr.mxu0 0.0
    %84 = vmatpush1.msra.mxu0 0.0
    %85 = vmatprep.subr.mxu0 0.0
    %86 = vmatpush1.msra.mxu0 0.0
    %87 = vmatprep.subr.mxu0 0.0
    %88 = vmatpush1.msra.mxu0 %v51
    %89 = vmatprep.subr.mxu0 0.0
    %90 = vmatpush1.msra.mxu0 %v50
    %91 = vmatprep.subr.mxu0 0.0
    %92 = vmatpush2.msra.mxu0 0.0
    %93 = vmatprep.subr.mxu0 0.0
    %94 = vmatpush2.msra.mxu0 0.0
    %95 = vmatprep.subr.mxu0 0.0
    %96 = vmatpush2.msra.mxu0 0.0
    %97 = vmatprep.subr.mxu0 0.0
    %98 = vmatpush2.msra.mxu0 0.0
    %99 = vmatprep.subr.mxu0 0.0
    %100 = vmatpush2.msra.mxu0 0.0
    %101 = vmatprep.subr.mxu0 0.0
    %102 = vmatpush2.msra.mxu0 0.0
    %103 = vmatprep.subr.mxu0 0.0
    %104 = vmatpush2.msra.mxu0 0.0
    %105 = vmatprep.subr.mxu0 0.0
    %106 = vmatpush2.msra.mxu0 0.0
    %107 = vmatprep.subr.mxu0 0.0
    %108 = vmatpush2.msra.mxu0 0.0
    %109 = vmatprep.subr.mxu0 0.0
    %110 = vmatpush2.msra.mxu0 0.0
    %111 = vmatprep.subr.mxu0 0.0
    %112 = vmatpush2.msra.mxu0 0.0
    %113 = vmatprep.subr.mxu0 0.0
    %114 = vmatpush2.msra.mxu0 0.0
    %115 = vmatprep.subr.mxu0 0.0
    %116 = vmatpush2.msra.mxu0 0.0
    %117 = vmatprep.subr.mxu0 0.0
    %118 = vmatpush2.msra.mxu0 0.0
    %119 = vmatprep.subr.mxu0 0.0
    %120 = vmatpush2.msra.mxu0 0.0
    %121 = vmatprep.subr.mxu0 0.0
    %122 = vmatpush2.msra.mxu0 0.0
    %123 = vmatprep.mubr.f32.mxu0 0.0
    %124 = vmatmul.mubr.f32.gmra.mxu0 %v54
    %v125 = vpop.f32.mrf.mxu0
    %v126 = vadd.f32 0.0, %v125
    %v127 = vpop.f32.mrf.mxu0
    %128 = vmatprep.mubr.f32.mxu0 0.0
    %129 = vmatmul.mubr.f32.gmra.mxu0 %v57
    %v130 = vpop.f32.mrf.mxu0
    %v131 = vadd.f32 0.0, %v130
    %v132 = vpop.f32.mrf.mxu0
    %133 = vdwg.mxu0
    %s134 = sld [smem:[#allocation3 + $0x1]]
    %s135 = smul.u32 %s134, 16
    %s136 = scalar_lea.vmem [#allocation4], %s135
    %v137 = vld [vmem:[%s136] sm:$0xff]
    %v138 = vld [vmem:[%s136 + $0x8] sm:$0xff]
    %s139 = scalar_lea.vmem [#allocation7], 16
    %v140 = vld [vmem:[%s139] sm:$0xff]
    %v141 = vld [vmem:[%s139 + $0x8] sm:$0xff]
    %v143 = vsel %vm52, %v137, 0
    %v146 = vsel %vm52, %v138, 0
    %148 = vmatprep.subr.mxu0 0.0
    %149 = vmatpush1.msra.mxu0 0.0
    %150 = vmatprep.subr.mxu0 0.0
    %151 = vmatpush1.msra.mxu0 0.0
    %152 = vmatprep.subr.mxu0 0.0
    %153 = vmatpush1.msra.mxu0 0.0
    %154 = vmatprep.subr.mxu0 0.0
    %155 = vmatpush1.msra.mxu0 0.0
    %156 = vmatprep.subr.mxu0 0.0
    %157 = vmatpush1.msra.mxu0 0.0
    %158 = vmatprep.subr.mxu0 0.0
    %159 = vmatpush1.msra.mxu0 0.0
    %160 = vmatprep.subr.mxu0 0.0
    %161 = vmatpush1.msra.mxu0 0.0
    %162 = vmatprep.subr.mxu0 0.0
    %163 = vmatpush1.msra.mxu0 0.0
    %164 = vmatprep.subr.mxu0 0.0
    %165 = vmatpush1.msra.mxu0 0.0
    %166 = vmatprep.subr.mxu0 0.0
    %167 = vmatpush1.msra.mxu0 0.0
    %168 = vmatprep.subr.mxu0 0.0
    %169 = vmatpush1.msra.mxu0 0.0
    %170 = vmatprep.subr.mxu0 0.0
    %171 = vmatpush1.msra.mxu0 0.0
    %172 = vmatprep.subr.mxu0 0.0
    %173 = vmatpush1.msra.mxu0 0.0
    %174 = vmatprep.subr.mxu0 0.0
    %175 = vmatpush1.msra.mxu0 0.0
    %176 = vmatprep.subr.mxu0 0.0
    %177 = vmatpush1.msra.mxu0 %v141
    %178 = vmatprep.subr.mxu0 0.0
    %179 = vmatpush1.msra.mxu0 %v140
    %180 = vmatprep.subr.mxu0 0.0
    %181 = vmatpush2.msra.mxu0 0.0
    %182 = vmatprep.subr.mxu0 0.0
    %183 = vmatpush2.msra.mxu0 0.0
    %184 = vmatprep.subr.mxu0 0.0
    %185 = vmatpush2.msra.mxu0 0.0
    %186 = vmatprep.subr.mxu0 0.0
    %187 = vmatpush2.msra.mxu0 0.0
    %188 = vmatprep.subr.mxu0 0.0
    %189 = vmatpush2.msra.mxu0 0.0
    %190 = vmatprep.subr.mxu0 0.0
    %191 = vmatpush2.msra.mxu0 0.0
    %192 = vmatprep.subr.mxu0 0.0
    %193 = vmatpush2.msra.mxu0 0.0
    %194 = vmatprep.subr.mxu0 0.0
    %195 = vmatpush2.msra.mxu0 0.0
    %196 = vmatprep.subr.mxu0 0.0
    %197 = vmatpush2.msra.mxu0 0.0
    %198 = vmatprep.subr.mxu0 0.0
    %199 = vmatpush2.msra.mxu0 0.0
    %200 = vmatprep.subr.mxu0 0.0
    %201 = vmatpush2.msra.mxu0 0.0
    %202 = vmatprep.subr.mxu0 0.0
    %203 = vmatpush2.msra.mxu0 0.0
    %204 = vmatprep.subr.mxu0 0.0
    %205 = vmatpush2.msra.mxu0 0.0
    %206 = vmatprep.subr.mxu0 0.0
    %207 = vmatpush2.msra.mxu0 0.0
    %208 = vmatprep.subr.mxu0 0.0
    %209 = vmatpush2.msra.mxu0 0.0
    %210 = vmatprep.subr.mxu0 0.0
    %211 = vmatpush2.msra.mxu0 0.0
    %212 = vmatprep.mubr.f32.mxu0 0.0
    %213 = vmatmul.mubr.f32.gmra.mxu0 %v143
    %v214 = vpop.f32.mrf.mxu0
    %v215 = vadd.f32 0.0, %v214
    %v216 = vpop.f32.mrf.mxu0
    %217 = vmatprep.mubr.f32.mxu0 0.0
    %218 = vmatmul.mubr.f32.gmra.mxu0 %v146
    %v219 = vpop.f32.mrf.mxu0
    %v220 = vadd.f32 0.0, %v219
    %v221 = vpop.f32.mrf.mxu0
    %222 = vdwg.mxu0
    %s223 = sld [smem:[#allocation3 + $0x2]]
    %s224 = smul.u32 %s223, 16
    %s225 = scalar_lea.vmem [#allocation4], %s224
    %v226 = vld [vmem:[%s225] sm:$0xff]
    %v227 = vld [vmem:[%s225 + $0x8] sm:$0xff]
    %s228 = scalar_lea.vmem [#allocation7], 32
    %v229 = vld [vmem:[%s228] sm:$0xff]
    %v230 = vld [vmem:[%s228 + $0x8] sm:$0xff]
    %v232 = vsel %vm52, %v226, 0
    %v235 = vsel %vm52, %v227, 0
    %237 = vmatprep.subr.mxu0 0.0
    %238 = vmatpush1.msra.mxu0 0.0
    %239 = vmatprep.subr.mxu0 0.0
    %240 = vmatpush1.msra.mxu0 0.0
    %241 = vmatprep.subr.mxu0 0.0
    %242 = vmatpush1.msra.mxu0 0.0
    %243 = vmatprep.subr.mxu0 0.0
    %244 = vmatpush1.msra.mxu0 0.0
    %245 = vmatprep.subr.mxu0 0.0
    %246 = vmatpush1.msra.mxu0 0.0
    %247 = vmatprep.subr.mxu0 0.0
    %248 = vmatpush1.msra.mxu0 0.0
    %249 = vmatprep.subr.mxu0 0.0
    %250 = vmatpush1.msra.mxu0 0.0
    %251 = vmatprep.subr.mxu0 0.0
    %252 = vmatpush1.msra.mxu0 0.0
    %253 = vmatprep.subr.mxu0 0.0
    %254 = vmatpush1.msra.mxu0 0.0
    %255 = vmatprep.subr.mxu0 0.0
    %256 = vmatpush1.msra.mxu0 0.0
    %257 = vmatprep.subr.mxu0 0.0
    %258 = vmatpush1.msra.mxu0 0.0
    %259 = vmatprep.subr.mxu0 0.0
    %260 = vmatpush1.msra.mxu0 0.0
    %261 = vmatprep.subr.mxu0 0.0
    %262 = vmatpush1.msra.mxu0 0.0
    %263 = vmatprep.subr.mxu0 0.0
    %264 = vmatpush1.msra.mxu0 0.0
    %265 = vmatprep.subr.mxu0 0.0
    %266 = vmatpush1.msra.mxu0 %v230
    %267 = vmatprep.subr.mxu0 0.0
    %268 = vmatpush1.msra.mxu0 %v229
    %269 = vmatprep.subr.mxu0 0.0
    %270 = vmatpush2.msra.mxu0 0.0
    %271 = vmatprep.subr.mxu0 0.0
    %272 = vmatpush2.msra.mxu0 0.0
    %273 = vmatprep.subr.mxu0 0.0
    %274 = vmatpush2.msra.mxu0 0.0
    %275 = vmatprep.subr.mxu0 0.0
    %276 = vmatpush2.msra.mxu0 0.0
    %277 = vmatprep.subr.mxu0 0.0
    %278 = vmatpush2.msra.mxu0 0.0
    %279 = vmatprep.subr.mxu0 0.0
    %280 = vmatpush2.msra.mxu0 0.0
    %281 = vmatprep.subr.mxu0 0.0
    %282 = vmatpush2.msra.mxu0 0.0
    %283 = vmatprep.subr.mxu0 0.0
    %284 = vmatpush2.msra.mxu0 0.0
    %285 = vmatprep.subr.mxu0 0.0
    %286 = vmatpush2.msra.mxu0 0.0
    %287 = vmatprep.subr.mxu0 0.0
    %288 = vmatpush2.msra.mxu0 0.0
    %289 = vmatprep.subr.mxu0 0.0
    %290 = vmatpush2.msra.mxu0 0.0
    %291 = vmatprep.subr.mxu0 0.0
    %292 = vmatpush2.msra.mxu0 0.0
    %293 = vmatprep.subr.mxu0 0.0
    %294 = vmatpush2.msra.mxu0 0.0
    %295 = vmatprep.subr.mxu0 0.0
    %296 = vmatpush2.msra.mxu0 0.0
    %297 = vmatprep.subr.mxu0 0.0
    %298 = vmatpush2.msra.mxu0 0.0
    %299 = vmatprep.subr.mxu0 0.0
    %300 = vmatpush2.msra.mxu0 0.0
    %301 = vmatprep.mubr.f32.mxu0 0.0
    %302 = vmatmul.mubr.f32.gmra.mxu0 %v232
    %v303 = vpop.f32.mrf.mxu0
    %v304 = vadd.f32 0.0, %v303
    %v305 = vpop.f32.mrf.mxu0
    %306 = vmatprep.mubr.f32.mxu0 0.0
    %307 = vmatmul.mubr.f32.gmra.mxu0 %v235
    %v308 = vpop.f32.mrf.mxu0
    %v309 = vadd.f32 0.0, %v308
    %v310 = vpop.f32.mrf.mxu0
    %311 = vdwg.mxu0
    %s312 = sld [smem:[#allocation3 + $0x3]]
    %s313 = smul.u32 %s312, 16
    %s314 = scalar_lea.vmem [#allocation4], %s313
    %v315 = vld [vmem:[%s314] sm:$0xff]
    %v316 = vld [vmem:[%s314 + $0x8] sm:$0xff]
    %s317 = scalar_lea.vmem [#allocation7], 48
    %v318 = vld [vmem:[%s317] sm:$0xff]
    %v319 = vld [vmem:[%s317 + $0x8] sm:$0xff]
    %v321 = vsel %vm52, %v315, 0
    %v324 = vsel %vm52, %v316, 0
    %326 = vmatprep.subr.mxu0 0.0
    %327 = vmatpush1.msra.mxu0 0.0
    %328 = vmatprep.subr.mxu0 0.0
    %329 = vmatpush1.msra.mxu0 0.0
    %330 = vmatprep.subr.mxu0 0.0
    %331 = vmatpush1.msra.mxu0 0.0
    %332 = vmatprep.subr.mxu0 0.0
    %333 = vmatpush1.msra.mxu0 0.0
    %334 = vmatprep.subr.mxu0 0.0
    %335 = vmatpush1.msra.mxu0 0.0
    %336 = vmatprep.subr.mxu0 0.0
    %337 = vmatpush1.msra.mxu0 0.0
    %338 = vmatprep.subr.mxu0 0.0
    %339 = vmatpush1.msra.mxu0 0.0
    %340 = vmatprep.subr.mxu0 0.0
    %341 = vmatpush1.msra.mxu0 0.0
    %342 = vmatprep.subr.mxu0 0.0
    %343 = vmatpush1.msra.mxu0 0.0
    %344 = vmatprep.subr.mxu0 0.0
    %345 = vmatpush1.msra.mxu0 0.0
    %346 = vmatprep.subr.mxu0 0.0
    %347 = vmatpush1.msra.mxu0 0.0
    %348 = vmatprep.subr.mxu0 0.0
    %349 = vmatpush1.msra.mxu0 0.0
    %350 = vmatprep.subr.mxu0 0.0
    %351 = vmatpush1.msra.mxu0 0.0
    %352 = vmatprep.subr.mxu0 0.0
    %353 = vmatpush1.msra.mxu0 0.0
    %354 = vmatprep.subr.mxu0 0.0
    %355 = vmatpush1.msra.mxu0 %v319
    %356 = vmatprep.subr.mxu0 0.0
    %357 = vmatpush1.msra.mxu0 %v318
    %358 = vmatprep.subr.mxu0 0.0
    %359 = vmatpush2.msra.mxu0 0.0
    %360 = vmatprep.subr.mxu0 0.0
    %361 = vmatpush2.msra.mxu0 0.0
    %362 = vmatprep.subr.mxu0 0.0
    %363 = vmatpush2.msra.mxu0 0.0
    %364 = vmatprep.subr.mxu0 0.0
    %365 = vmatpush2.msra.mxu0 0.0
    %366 = vmatprep.subr.mxu0 0.0
    %367 = vmatpush2.msra.mxu0 0.0
    %368 = vmatprep.subr.mxu0 0.0
    %369 = vmatpush2.msra.mxu0 0.0
    %370 = vmatprep.subr.mxu0 0.0
    %371 = vmatpush2.msra.mxu0 0.0
    %372 = vmatprep.subr.mxu0 0.0
    %373 = vmatpush2.msra.mxu0 0.0
    %374 = vmatprep.subr.mxu0 0.0
    %375 = vmatpush2.msra.mxu0 0.0
    %376 = vmatprep.subr.mxu0 0.0
    %377 = vmatpush2.msra.mxu0 0.0
    %378 = vmatprep.subr.mxu0 0.0
    %379 = vmatpush2.msra.mxu0 0.0
    %380 = vmatprep.subr.mxu0 0.0
    %381 = vmatpush2.msra.mxu0 0.0
    %382 = vmatprep.subr.mxu0 0.0
    %383 = vmatpush2.msra.mxu0 0.0
    %384 = vmatprep.subr.mxu0 0.0
    %385 = vmatpush2.msra.mxu0 0.0
    %386 = vmatprep.subr.mxu0 0.0
    %387 = vmatpush2.msra.mxu0 0.0
    %388 = vmatprep.subr.mxu0 0.0
    %389 = vmatpush2.msra.mxu0 0.0
    %390 = vmatprep.mubr.f32.mxu0 0.0
    %391 = vmatmul.mubr.f32.gmra.mxu0 %v321
    %v392 = vpop.f32.mrf.mxu0
    %v393 = vadd.f32 0.0, %v392
    %v394 = vpop.f32.mrf.mxu0
    %395 = vmatprep.mubr.f32.mxu0 0.0
    %396 = vmatmul.mubr.f32.gmra.mxu0 %v324
    %v397 = vpop.f32.mrf.mxu0
    %v398 = vadd.f32 0.0, %v397
    %v399 = vpop.f32.mrf.mxu0
    %400 = vdwg.mxu0
    %403 = vrot.lane.b32.xlu0 %v215, 32
    %v404 = vpop.permute.xlu0 %403
    %405 = vrot.lane.b32.xlu0 %v220, 32
    %v406 = vpop.permute.xlu0 %405
    %411 = vrot.lane.b32.xlu0 %v304, 64
    %v412 = vpop.permute.xlu0 %411
    %413 = vrot.lane.b32.xlu0 %v309, 64
    %v414 = vpop.permute.xlu0 %413
    %419 = vrot.lane.b32.xlu0 %v393, 96
    %v420 = vpop.permute.xlu0 %419
    %421 = vrot.lane.b32.xlu0 %v398, 96
    %v422 = vpop.permute.xlu0 %421
    %vm425 = vcmask 261120
    %v426 = vsel %vm425, %v126, %v404
    %v427 = vsel %vm425, %v131, %v406
    %vm428 = vcmask 523264
    %v429 = vsel %vm428, %v426, %v412
    %v430 = vsel %vm428, %v427, %v414
    %vm431 = vcmask 785408
    %v432 = vsel %vm431, %v429, %v420
    %v433 = vsel %vm431, %v430, %v422
    %434 = vst [vmem:[#allocation9] sm:$0xff] %v432
    %435 = vst [vmem:[#allocation9 + $0x18] sm:$0xff] %v433
    %s436 = sld [smem:[#allocation3 + $0x4]]
    %s437 = smul.u32 %s436, 16
    %s438 = scalar_lea.vmem [#allocation4], %s437
    %v439 = vld [vmem:[%s438] sm:$0xff]
    %v440 = vld [vmem:[%s438 + $0x8] sm:$0xff]
    %s441 = scalar_lea.vmem [#allocation7], 64
    %v442 = vld [vmem:[%s441] sm:$0xff]
    %v443 = vld [vmem:[%s441 + $0x8] sm:$0xff]
    %v445 = vsel %vm52, %v439, 0
    %v448 = vsel %vm52, %v440, 0
    %450 = vmatprep.subr.mxu0 0.0
    %451 = vmatpush1.msra.mxu0 0.0
    %452 = vmatprep.subr.mxu0 0.0
    %453 = vmatpush1.msra.mxu0 0.0
    %454 = vmatprep.subr.mxu0 0.0
    %455 = vmatpush1.msra.mxu0 0.0
    %456 = vmatprep.subr.mxu0 0.0
    %457 = vmatpush1.msra.mxu0 0.0
    %458 = vmatprep.subr.mxu0 0.0
    %459 = vmatpush1.msra.mxu0 0.0
    %460 = vmatprep.subr.mxu0 0.0
    %461 = vmatpush1.msra.mxu0 0.0
    %462 = vmatprep.subr.mxu0 0.0
    %463 = vmatpush1.msra.mxu0 0.0
    %464 = vmatprep.subr.mxu0 0.0
    %465 = vmatpush1.msra.mxu0 0.0
    %466 = vmatprep.subr.mxu0 0.0
    %467 = vmatpush1.msra.mxu0 0.0
    %468 = vmatprep.subr.mxu0 0.0
    %469 = vmatpush1.msra.mxu0 0.0
    %470 = vmatprep.subr.mxu0 0.0
    %471 = vmatpush1.msra.mxu0 0.0
    %472 = vmatprep.subr.mxu0 0.0
    %473 = vmatpush1.msra.mxu0 0.0
    %474 = vmatprep.subr.mxu0 0.0
    %475 = vmatpush1.msra.mxu0 0.0
    %476 = vmatprep.subr.mxu0 0.0
    %477 = vmatpush1.msra.mxu0 0.0
    %478 = vmatprep.subr.mxu0 0.0
    %479 = vmatpush1.msra.mxu0 %v443
    %480 = vmatprep.subr.mxu0 0.0
    %481 = vmatpush1.msra.mxu0 %v442
    %482 = vmatprep.subr.mxu0 0.0
    %483 = vmatpush2.msra.mxu0 0.0
    %484 = vmatprep.subr.mxu0 0.0
    %485 = vmatpush2.msra.mxu0 0.0
    %486 = vmatprep.subr.mxu0 0.0
    %487 = vmatpush2.msra.mxu0 0.0
    %488 = vmatprep.subr.mxu0 0.0
    %489 = vmatpush2.msra.mxu0 0.0
    %490 = vmatprep.subr.mxu0 0.0
    %491 = vmatpush2.msra.mxu0 0.0
    %492 = vmatprep.subr.mxu0 0.0
    %493 = vmatpush2.msra.mxu0 0.0
    %494 = vmatprep.subr.mxu0 0.0
    %495 = vmatpush2.msra.mxu0 0.0
    %496 = vmatprep.subr.mxu0 0.0
    %497 = vmatpush2.msra.mxu0 0.0
    %498 = vmatprep.subr.mxu0 0.0
    %499 = vmatpush2.msra.mxu0 0.0
    %500 = vmatprep.subr.mxu0 0.0
    %501 = vmatpush2.msra.mxu0 0.0
    %502 = vmatprep.subr.mxu0 0.0
    %503 = vmatpush2.msra.mxu0 0.0
    %504 = vmatprep.subr.mxu0 0.0
    %505 = vmatpush2.msra.mxu0 0.0
    %506 = vmatprep.subr.mxu0 0.0
    %507 = vmatpush2.msra.mxu0 0.0
    %508 = vmatprep.subr.mxu0 0.0
    %509 = vmatpush2.msra.mxu0 0.0
    %510 = vmatprep.subr.mxu0 0.0
    %511 = vmatpush2.msra.mxu0 0.0
    %512 = vmatprep.subr.mxu0 0.0
    %513 = vmatpush2.msra.mxu0 0.0
    %514 = vmatprep.mubr.f32.mxu0 0.0
    %515 = vmatmul.mubr.f32.gmra.mxu0 %v445
    %v516 = vpop.f32.mrf.mxu0
    %v517 = vadd.f32 0.0, %v516
    %v518 = vpop.f32.mrf.mxu0
    %519 = vmatprep.mubr.f32.mxu0 0.0
    %520 = vmatmul.mubr.f32.gmra.mxu0 %v448
    %v521 = vpop.f32.mrf.mxu0
    %v522 = vadd.f32 0.0, %v521
    %v523 = vpop.f32.mrf.mxu0
    %524 = vdwg.mxu0
    %s525 = sld [smem:[#allocation3 + $0x5]]
    %s526 = smul.u32 %s525, 16
    %s527 = scalar_lea.vmem [#allocation4], %s526
    %v528 = vld [vmem:[%s527] sm:$0xff]
    %v529 = vld [vmem:[%s527 + $0x8] sm:$0xff]
    %s530 = scalar_lea.vmem [#allocation7], 80
    %v531 = vld [vmem:[%s530] sm:$0xff]
    %v532 = vld [vmem:[%s530 + $0x8] sm:$0xff]
    %v534 = vsel %vm52, %v528, 0
    %v537 = vsel %vm52, %v529, 0
    %539 = vmatprep.subr.mxu0 0.0
    %540 = vmatpush1.msra.mxu0 0.0
    %541 = vmatprep.subr.mxu0 0.0
    %542 = vmatpush1.msra.mxu0 0.0
    %543 = vmatprep.subr.mxu0 0.0
    %544 = vmatpush1.msra.mxu0 0.0
    %545 = vmatprep.subr.mxu0 0.0
    %546 = vmatpush1.msra.mxu0 0.0
    %547 = vmatprep.subr.mxu0 0.0
    %548 = vmatpush1.msra.mxu0 0.0
    %549 = vmatprep.subr.mxu0 0.0
    %550 = vmatpush1.msra.mxu0 0.0
    %551 = vmatprep.subr.mxu0 0.0
    %552 = vmatpush1.msra.mxu0 0.0
    %553 = vmatprep.subr.mxu0 0.0
    %554 = vmatpush1.msra.mxu0 0.0
    %555 = vmatprep.subr.mxu0 0.0
    %556 = vmatpush1.msra.mxu0 0.0
    %557 = vmatprep.subr.mxu0 0.0
    %558 = vmatpush1.msra.mxu0 0.0
    %559 = vmatprep.subr.mxu0 0.0
    %560 = vmatpush1.msra.mxu0 0.0
    %561 = vmatprep.subr.mxu0 0.0
    %562 = vmatpush1.msra.mxu0 0.0
    %563 = vmatprep.subr.mxu0 0.0
    %564 = vmatpush1.msra.mxu0 0.0
    %565 = vmatprep.subr.mxu0 0.0
    %566 = vmatpush1.msra.mxu0 0.0
    %567 = vmatprep.subr.mxu0 0.0
    %568 = vmatpush1.msra.mxu0 %v532
    %569 = vmatprep.subr.mxu0 0.0
    %570 = vmatpush1.msra.mxu0 %v531
    %571 = vmatprep.subr.mxu0 0.0
    %572 = vmatpush2.msra.mxu0 0.0
    %573 = vmatprep.subr.mxu0 0.0
    %574 = vmatpush2.msra.mxu0 0.0
    %575 = vmatprep.subr.mxu0 0.0
    %576 = vmatpush2.msra.mxu0 0.0
    %577 = vmatprep.subr.mxu0 0.0
    %578 = vmatpush2.msra.mxu0 0.0
    %579 = vmatprep.subr.mxu0 0.0
    %580 = vmatpush2.msra.mxu0 0.0
    %581 = vmatprep.subr.mxu0 0.0
    %582 = vmatpush2.msra.mxu0 0.0
    %583 = vmatprep.subr.mxu0 0.0
    %584 = vmatpush2.msra.mxu0 0.0
    %585 = vmatprep.subr.mxu0 0.0
    %586 = vmatpush2.msra.mxu0 0.0
    %587 = vmatprep.subr.mxu0 0.0
    %588 = vmatpush2.msra.mxu0 0.0
    %589 = vmatprep.subr.mxu0 0.0
    %590 = vmatpush2.msra.mxu0 0.0
    %591 = vmatprep.subr.mxu0 0.0
    %592 = vmatpush2.msra.mxu0 0.0
    %593 = vmatprep.subr.mxu0 0.0
    %594 = vmatpush2.msra.mxu0 0.0
    %595 = vmatprep.subr.mxu0 0.0
    %596 = vmatpush2.msra.mxu0 0.0
    %597 = vmatprep.subr.mxu0 0.0
    %598 = vmatpush2.msra.mxu0 0.0
    %599 = vmatprep.subr.mxu0 0.0
    %600 = vmatpush2.msra.mxu0 0.0
    %601 = vmatprep.subr.mxu0 0.0
    %602 = vmatpush2.msra.mxu0 0.0
    %603 = vmatprep.mubr.f32.mxu0 0.0
    %604 = vmatmul.mubr.f32.gmra.mxu0 %v534
    %v605 = vpop.f32.mrf.mxu0
    %v606 = vadd.f32 0.0, %v605
    %v607 = vpop.f32.mrf.mxu0
    %608 = vmatprep.mubr.f32.mxu0 0.0
    %609 = vmatmul.mubr.f32.gmra.mxu0 %v537
    %v610 = vpop.f32.mrf.mxu0
    %v611 = vadd.f32 0.0, %v610
    %v612 = vpop.f32.mrf.mxu0
    %613 = vdwg.mxu0
    %s614 = sld [smem:[#allocation3 + $0x6]]
    %s615 = smul.u32 %s614, 16
    %s616 = scalar_lea.vmem [#allocation4], %s615
    %v617 = vld [vmem:[%s616] sm:$0xff]
    %v618 = vld [vmem:[%s616 + $0x8] sm:$0xff]
    %s619 = scalar_lea.vmem [#allocation7], 96
    %v620 = vld [vmem:[%s619] sm:$0xff]
    %v621 = vld [vmem:[%s619 + $0x8] sm:$0xff]
    %v623 = vsel %vm52, %v617, 0
    %v626 = vsel %vm52, %v618, 0
    %628 = vmatprep.subr.mxu0 0.0
    %629 = vmatpush1.msra.mxu0 0.0
    %630 = vmatprep.subr.mxu0 0.0
    %631 = vmatpush1.msra.mxu0 0.0
    %632 = vmatprep.subr.mxu0 0.0
    %633 = vmatpush1.msra.mxu0 0.0
    %634 = vmatprep.subr.mxu0 0.0
    %635 = vmatpush1.msra.mxu0 0.0
    %636 = vmatprep.subr.mxu0 0.0
    %637 = vmatpush1.msra.mxu0 0.0
    %638 = vmatprep.subr.mxu0 0.0
    %639 = vmatpush1.msra.mxu0 0.0
    %640 = vmatprep.subr.mxu0 0.0
    %641 = vmatpush1.msra.mxu0 0.0
    %642 = vmatprep.subr.mxu0 0.0
    %643 = vmatpush1.msra.mxu0 0.0
    %644 = vmatprep.subr.mxu0 0.0
    %645 = vmatpush1.msra.mxu0 0.0
    %646 = vmatprep.subr.mxu0 0.0
    %647 = vmatpush1.msra.mxu0 0.0
    %648 = vmatprep.subr.mxu0 0.0
    %649 = vmatpush1.msra.mxu0 0.0
    %650 = vmatprep.subr.mxu0 0.0
    %651 = vmatpush1.msra.mxu0 0.0
    %652 = vmatprep.subr.mxu0 0.0
    %653 = vmatpush1.msra.mxu0 0.0
    %654 = vmatprep.subr.mxu0 0.0
    %655 = vmatpush1.msra.mxu0 0.0
    %656 = vmatprep.subr.mxu0 0.0
    %657 = vmatpush1.msra.mxu0 %v621
    %658 = vmatprep.subr.mxu0 0.0
    %659 = vmatpush1.msra.mxu0 %v620
    %660 = vmatprep.subr.mxu0 0.0
    %661 = vmatpush2.msra.mxu0 0.0
    %662 = vmatprep.subr.mxu0 0.0
    %663 = vmatpush2.msra.mxu0 0.0
    %664 = vmatprep.subr.mxu0 0.0
    %665 = vmatpush2.msra.mxu0 0.0
    %666 = vmatprep.subr.mxu0 0.0
    %667 = vmatpush2.msra.mxu0 0.0
    %668 = vmatprep.subr.mxu0 0.0
    %669 = vmatpush2.msra.mxu0 0.0
    %670 = vmatprep.subr.mxu0 0.0
    %671 = vmatpush2.msra.mxu0 0.0
    %672 = vmatprep.subr.mxu0 0.0
    %673 = vmatpush2.msra.mxu0 0.0
    %674 = vmatprep.subr.mxu0 0.0
    %675 = vmatpush2.msra.mxu0 0.0
    %676 = vmatprep.subr.mxu0 0.0
    %677 = vmatpush2.msra.mxu0 0.0
    %678 = vmatprep.subr.mxu0 0.0
    %679 = vmatpush2.msra.mxu0 0.0
    %680 = vmatprep.subr.mxu0 0.0
    %681 = vmatpush2.msra.mxu0 0.0
    %682 = vmatprep.subr.mxu0 0.0
    %683 = vmatpush2.msra.mxu0 0.0
    %684 = vmatprep.subr.mxu0 0.0
    %685 = vmatpush2.msra.mxu0 0.0
    %686 = vmatprep.subr.mxu0 0.0
    %687 = vmatpush2.msra.mxu0 0.0
    %688 = vmatprep.subr.mxu0 0.0
    %689 = vmatpush2.msra.mxu0 0.0
    %690 = vmatprep.subr.mxu0 0.0
    %691 = vmatpush2.msra.mxu0 0.0
    %692 = vmatprep.mubr.f32.mxu0 0.0
    %693 = vmatmul.mubr.f32.gmra.mxu0 %v623
    %v694 = vpop.f32.mrf.mxu0
    %v695 = vadd.f32 0.0, %v694
    %v696 = vpop.f32.mrf.mxu0
    %697 = vmatprep.mubr.f32.mxu0 0.0
    %698 = vmatmul.mubr.f32.gmra.mxu0 %v626
    %v699 = vpop.f32.mrf.mxu0
    %v700 = vadd.f32 0.0, %v699
    %v701 = vpop.f32.mrf.mxu0
    %702 = vdwg.mxu0
    %s703 = sld [smem:[#allocation3 + $0x7]]
    %s704 = smul.u32 %s703, 16
    %s705 = scalar_lea.vmem [#allocation4], %s704
    %v706 = vld [vmem:[%s705] sm:$0xff]
    %v707 = vld [vmem:[%s705 + $0x8] sm:$0xff]
    %s708 = scalar_lea.vmem [#allocation7], 112
    %v709 = vld [vmem:[%s708] sm:$0xff]
    %v710 = vld [vmem:[%s708 + $0x8] sm:$0xff]
    %v712 = vsel %vm52, %v706, 0
    %v715 = vsel %vm52, %v707, 0
    %717 = vmatprep.subr.mxu0 0.0
    %718 = vmatpush1.msra.mxu0 0.0
    %719 = vmatprep.subr.mxu0 0.0
    %720 = vmatpush1.msra.mxu0 0.0
    %721 = vmatprep.subr.mxu0 0.0
    %722 = vmatpush1.msra.mxu0 0.0
    %723 = vmatprep.subr.mxu0 0.0
    %724 = vmatpush1.msra.mxu0 0.0
    %725 = vmatprep.subr.mxu0 0.0
    %726 = vmatpush1.msra.mxu0 0.0
    %727 = vmatprep.subr.mxu0 0.0
    %728 = vmatpush1.msra.mxu0 0.0
    %729 = vmatprep.subr.mxu0 0.0
    %730 = vmatpush1.msra.mxu0 0.0
    %731 = vmatprep.subr.mxu0 0.0
    %732 = vmatpush1.msra.mxu0 0.0
    %733 = vmatprep.subr.mxu0 0.0
    %734 = vmatpush1.msra.mxu0 0.0
    %735 = vmatprep.subr.mxu0 0.0
    %736 = vmatpush1.msra.mxu0 0.0
    %737 = vmatprep.subr.mxu0 0.0
    %738 = vmatpush1.msra.mxu0 0.0
    %739 = vmatprep.subr.mxu0 0.0
    %740 = vmatpush1.msra.mxu0 0.0
    %741 = vmatprep.subr.mxu0 0.0
    %742 = vmatpush1.msra.mxu0 0.0
    %743 = vmatprep.subr.mxu0 0.0
    %744 = vmatpush1.msra.mxu0 0.0
    %745 = vmatprep.subr.mxu0 0.0
    %746 = vmatpush1.msra.mxu0 %v710
    %747 = vmatprep.subr.mxu0 0.0
    %748 = vmatpush1.msra.mxu0 %v709
    %749 = vmatprep.subr.mxu0 0.0
    %750 = vmatpush2.msra.mxu0 0.0
    %751 = vmatprep.subr.mxu0 0.0
    %752 = vmatpush2.msra.mxu0 0.0
    %753 = vmatprep.subr.mxu0 0.0
    %754 = vmatpush2.msra.mxu0 0.0
    %755 = vmatprep.subr.mxu0 0.0
    %756 = vmatpush2.msra.mxu0 0.0
    %757 = vmatprep.subr.mxu0 0.0
    %758 = vmatpush2.msra.mxu0 0.0
    %759 = vmatprep.subr.mxu0 0.0
    %760 = vmatpush2.msra.mxu0 0.0
    %761 = vmatprep.subr.mxu0 0.0
    %762 = vmatpush2.msra.mxu0 0.0
    %763 = vmatprep.subr.mxu0 0.0
    %764 = vmatpush2.msra.mxu0 0.0
    %765 = vmatprep.subr.mxu0 0.0
    %766 = vmatpush2.msra.mxu0 0.0
    %767 = vmatprep.subr.mxu0 0.0
    %768 = vmatpush2.msra.mxu0 0.0
    %769 = vmatprep.subr.mxu0 0.0
    %770 = vmatpush2.msra.mxu0 0.0
    %771 = vmatprep.subr.mxu0 0.0
    %772 = vmatpush2.msra.mxu0 0.0
    %773 = vmatprep.subr.mxu0 0.0
    %774 = vmatpush2.msra.mxu0 0.0
    %775 = vmatprep.subr.mxu0 0.0
    %776 = vmatpush2.msra.mxu0 0.0
    %777 = vmatprep.subr.mxu0 0.0
    %778 = vmatpush2.msra.mxu0 0.0
    %779 = vmatprep.subr.mxu0 0.0
    %780 = vmatpush2.msra.mxu0 0.0
    %781 = vmatprep.mubr.f32.mxu0 0.0
    %782 = vmatmul.mubr.f32.gmra.mxu0 %v712
    %v783 = vpop.f32.mrf.mxu0
    %v784 = vadd.f32 0.0, %v783
    %v785 = vpop.f32.mrf.mxu0
    %786 = vmatprep.mubr.f32.mxu0 0.0
    %787 = vmatmul.mubr.f32.gmra.mxu0 %v715
    %v788 = vpop.f32.mrf.mxu0
    %v789 = vadd.f32 0.0, %v788
    %v790 = vpop.f32.mrf.mxu0
    %791 = vdwg.mxu0
    %794 = vrot.lane.b32.xlu0 %v606, 32
    %v795 = vpop.permute.xlu0 %794
    %796 = vrot.lane.b32.xlu0 %v611, 32
    %v797 = vpop.permute.xlu0 %796
    %802 = vrot.lane.b32.xlu0 %v695, 64
    %v803 = vpop.permute.xlu0 %802
    %804 = vrot.lane.b32.xlu0 %v700, 64
    %v805 = vpop.permute.xlu0 %804
    %810 = vrot.lane.b32.xlu0 %v784, 96
    %v811 = vpop.permute.xlu0 %810
    %812 = vrot.lane.b32.xlu0 %v789, 96
    %v813 = vpop.permute.xlu0 %812
    %v816 = vsel %vm425, %v517, %v795
    %v817 = vsel %vm425, %v522, %v797
    %v818 = vsel %vm428, %v816, %v803
    %v819 = vsel %vm428, %v817, %v805
    %v820 = vsel %vm431, %v818, %v811
    %v821 = vsel %vm431, %v819, %v813
    %822 = vst [vmem:[#allocation9 + $0x8] sm:$0xff] %v820
    %823 = vst [vmem:[#allocation9 + $0x20] sm:$0xff] %v821
    %s824 = sld [smem:[#allocation3 + $0x8]]
    %s825 = smul.u32 %s824, 16
    %s826 = scalar_lea.vmem [#allocation4], %s825
    %v827 = vld [vmem:[%s826] sm:$0xff]
    %v828 = vld [vmem:[%s826 + $0x8] sm:$0xff]
    %s829 = scalar_lea.vmem [#allocation7], 128
    %v830 = vld [vmem:[%s829] sm:$0xff]
    %v831 = vld [vmem:[%s829 + $0x8] sm:$0xff]
    %v833 = vsel %vm52, %v827, 0
    %v836 = vsel %vm52, %v828, 0
    %838 = vmatprep.subr.mxu0 0.0
    %839 = vmatpush1.msra.mxu0 0.0
    %840 = vmatprep.subr.mxu0 0.0
    %841 = vmatpush1.msra.mxu0 0.0
    %842 = vmatprep.subr.mxu0 0.0
    %843 = vmatpush1.msra.mxu0 0.0
    %844 = vmatprep.subr.mxu0 0.0
    %845 = vmatpush1.msra.mxu0 0.0
    %846 = vmatprep.subr.mxu0 0.0
    %847 = vmatpush1.msra.mxu0 0.0
    %848 = vmatprep.subr.mxu0 0.0
    %849 = vmatpush1.msra.mxu0 0.0
    %850 = vmatprep.subr.mxu0 0.0
    %851 = vmatpush1.msra.mxu0 0.0
    %852 = vmatprep.subr.mxu0 0.0
    %853 = vmatpush1.msra.mxu0 0.0
    %854 = vmatprep.subr.mxu0 0.0
    %855 = vmatpush1.msra.mxu0 0.0
    %856 = vmatprep.subr.mxu0 0.0
    %857 = vmatpush1.msra.mxu0 0.0
    %858 = vmatprep.subr.mxu0 0.0
    %859 = vmatpush1.msra.mxu0 0.0
    %860 = vmatprep.subr.mxu0 0.0
    %861 = vmatpush1.msra.mxu0 0.0
    %862 = vmatprep.subr.mxu0 0.0
    %863 = vmatpush1.msra.mxu0 0.0
    %864 = vmatprep.subr.mxu0 0.0
    %865 = vmatpush1.msra.mxu0 0.0
    %866 = vmatprep.subr.mxu0 0.0
    %867 = vmatpush1.msra.mxu0 %v831
    %868 = vmatprep.subr.mxu0 0.0
    %869 = vmatpush1.msra.mxu0 %v830
    %870 = vmatprep.subr.mxu0 0.0
    %871 = vmatpush2.msra.mxu0 0.0
    %872 = vmatprep.subr.mxu0 0.0
    %873 = vmatpush2.msra.mxu0 0.0
    %874 = vmatprep.subr.mxu0 0.0
    %875 = vmatpush2.msra.mxu0 0.0
    %876 = vmatprep.subr.mxu0 0.0
    %877 = vmatpush2.msra.mxu0 0.0
    %878 = vmatprep.subr.mxu0 0.0
    %879 = vmatpush2.msra.mxu0 0.0
    %880 = vmatprep.subr.mxu0 0.0
    %881 = vmatpush2.msra.mxu0 0.0
    %882 = vmatprep.subr.mxu0 0.0
    %883 = vmatpush2.msra.mxu0 0.0
    %884 = vmatprep.subr.mxu0 0.0
    %885 = vmatpush2.msra.mxu0 0.0
    %886 = vmatprep.subr.mxu0 0.0
    %887 = vmatpush2.msra.mxu0 0.0
    %888 = vmatprep.subr.mxu0 0.0
    %889 = vmatpush2.msra.mxu0 0.0
    %890 = vmatprep.subr.mxu0 0.0
    %891 = vmatpush2.msra.mxu0 0.0
    %892 = vmatprep.subr.mxu0 0.0
    %893 = vmatpush2.msra.mxu0 0.0
    %894 = vmatprep.subr.mxu0 0.0
    %895 = vmatpush2.msra.mxu0 0.0
    %896 = vmatprep.subr.mxu0 0.0
    %897 = vmatpush2.msra.mxu0 0.0
    %898 = vmatprep.subr.mxu0 0.0
    %899 = vmatpush2.msra.mxu0 0.0
    %900 = vmatprep.subr.mxu0 0.0
    %901 = vmatpush2.msra.mxu0 0.0
    %902 = vmatprep.mubr.f32.mxu0 0.0
    %903 = vmatmul.mubr.f32.gmra.mxu0 %v833
    %v904 = vpop.f32.mrf.mxu0
    %v905 = vadd.f32 0.0, %v904
    %v906 = vpop.f32.mrf.mxu0
    %907 = vmatprep.mubr.f32.mxu0 0.0
    %908 = vmatmul.mubr.f32.gmra.mxu0 %v836
    %v909 = vpop.f32.mrf.mxu0
    %v910 = vadd.f32 0.0, %v909
    %v911 = vpop.f32.mrf.mxu0
    %912 = vdwg.mxu0
    %s913 = sld [smem:[#allocation3 + $0x9]]
    %s914 = smul.u32 %s913, 16
    %s915 = scalar_lea.vmem [#allocation4], %s914
    %v916 = vld [vmem:[%s915] sm:$0xff]
    %v917 = vld [vmem:[%s915 + $0x8] sm:$0xff]
    %s918 = scalar_lea.vmem [#allocation7], 144
    %v919 = vld [vmem:[%s918] sm:$0xff]
    %v920 = vld [vmem:[%s918 + $0x8] sm:$0xff]
    %v922 = vsel %vm52, %v916, 0
    %v925 = vsel %vm52, %v917, 0
    %927 = vmatprep.subr.mxu0 0.0
    %928 = vmatpush1.msra.mxu0 0.0
    %929 = vmatprep.subr.mxu0 0.0
    %930 = vmatpush1.msra.mxu0 0.0
    %931 = vmatprep.subr.mxu0 0.0
    %932 = vmatpush1.msra.mxu0 0.0
    %933 = vmatprep.subr.mxu0 0.0
    %934 = vmatpush1.msra.mxu0 0.0
    %935 = vmatprep.subr.mxu0 0.0
    %936 = vmatpush1.msra.mxu0 0.0
    %937 = vmatprep.subr.mxu0 0.0
    %938 = vmatpush1.msra.mxu0 0.0
    %939 = vmatprep.subr.mxu0 0.0
    %940 = vmatpush1.msra.mxu0 0.0
    %941 = vmatprep.subr.mxu0 0.0
    %942 = vmatpush1.msra.mxu0 0.0
    %943 = vmatprep.subr.mxu0 0.0
    %944 = vmatpush1.msra.mxu0 0.0
    %945 = vmatprep.subr.mxu0 0.0
    %946 = vmatpush1.msra.mxu0 0.0
    %947 = vmatprep.subr.mxu0 0.0
    %948 = vmatpush1.msra.mxu0 0.0
    %949 = vmatprep.subr.mxu0 0.0
    %950 = vmatpush1.msra.mxu0 0.0
    %951 = vmatprep.subr.mxu0 0.0
    %952 = vmatpush1.msra.mxu0 0.0
    %953 = vmatprep.subr.mxu0 0.0
    %954 = vmatpush1.msra.mxu0 0.0
    %955 = vmatprep.subr.mxu0 0.0
    %956 = vmatpush1.msra.mxu0 %v920
    %957 = vmatprep.subr.mxu0 0.0
    %958 = vmatpush1.msra.mxu0 %v919
    %959 = vmatprep.subr.mxu0 0.0
    %960 = vmatpush2.msra.mxu0 0.0
    %961 = vmatprep.subr.mxu0 0.0
    %962 = vmatpush2.msra.mxu0 0.0
    %963 = vmatprep.subr.mxu0 0.0
    %964 = vmatpush2.msra.mxu0 0.0
    %965 = vmatprep.subr.mxu0 0.0
    %966 = vmatpush2.msra.mxu0 0.0
    %967 = vmatprep.subr.mxu0 0.0
    %968 = vmatpush2.msra.mxu0 0.0
    %969 = vmatprep.subr.mxu0 0.0
    %970 = vmatpush2.msra.mxu0 0.0
    %971 = vmatprep.subr.mxu0 0.0
    %972 = vmatpush2.msra.mxu0 0.0
    %973 = vmatprep.subr.mxu0 0.0
    %974 = vmatpush2.msra.mxu0 0.0
    %975 = vmatprep.subr.mxu0 0.0
    %976 = vmatpush2.msra.mxu0 0.0
    %977 = vmatprep.subr.mxu0 0.0
    %978 = vmatpush2.msra.mxu0 0.0
    %979 = vmatprep.subr.mxu0 0.0
    %980 = vmatpush2.msra.mxu0 0.0
    %981 = vmatprep.subr.mxu0 0.0
    %982 = vmatpush2.msra.mxu0 0.0
    %983 = vmatprep.subr.mxu0 0.0
    %984 = vmatpush2.msra.mxu0 0.0
    %985 = vmatprep.subr.mxu0 0.0
    %986 = vmatpush2.msra.mxu0 0.0
    %987 = vmatprep.subr.mxu0 0.0
    %988 = vmatpush2.msra.mxu0 0.0
    %989 = vmatprep.subr.mxu0 0.0
    %990 = vmatpush2.msra.mxu0 0.0
    %991 = vmatprep.mubr.f32.mxu0 0.0
    %992 = vmatmul.mubr.f32.gmra.mxu0 %v922
    %v993 = vpop.f32.mrf.mxu0
    %v994 = vadd.f32 0.0, %v993
    %v995 = vpop.f32.mrf.mxu0
    %996 = vmatprep.mubr.f32.mxu0 0.0
    %997 = vmatmul.mubr.f32.gmra.mxu0 %v925
    %v998 = vpop.f32.mrf.mxu0
    %v999 = vadd.f32 0.0, %v998
    %v1000 = vpop.f32.mrf.mxu0
    %1001 = vdwg.mxu0
    %s1002 = sld [smem:[#allocation3 + $0xa]]
    %s1003 = smul.u32 %s1002, 16
    %s1004 = scalar_lea.vmem [#allocation4], %s1003
    %v1005 = vld [vmem:[%s1004] sm:$0xff]
    %v1006 = vld [vmem:[%s1004 + $0x8] sm:$0xff]
    %s1007 = scalar_lea.vmem [#allocation7], 160
    %v1008 = vld [vmem:[%s1007] sm:$0xff]
    %v1009 = vld [vmem:[%s1007 + $0x8] sm:$0xff]
    %v1011 = vsel %vm52, %v1005, 0
    %v1014 = vsel %vm52, %v1006, 0
    %1016 = vmatprep.subr.mxu0 0.0
    %1017 = vmatpush1.msra.mxu0 0.0
    %1018 = vmatprep.subr.mxu0 0.0
    %1019 = vmatpush1.msra.mxu0 0.0
    %1020 = vmatprep.subr.mxu0 0.0
    %1021 = vmatpush1.msra.mxu0 0.0
    %1022 = vmatprep.subr.mxu0 0.0
    %1023 = vmatpush1.msra.mxu0 0.0
    %1024 = vmatprep.subr.mxu0 0.0
    %1025 = vmatpush1.msra.mxu0 0.0
    %1026 = vmatprep.subr.mxu0 0.0
    %1027 = vmatpush1.msra.mxu0 0.0
    %1028 = vmatprep.subr.mxu0 0.0
    %1029 = vmatpush1.msra.mxu0 0.0
    %1030 = vmatprep.subr.mxu0 0.0
    %1031 = vmatpush1.msra.mxu0 0.0
    %1032 = vmatprep.subr.mxu0 0.0
    %1033 = vmatpush1.msra.mxu0 0.0
    %1034 = vmatprep.subr.mxu0 0.0
    %1035 = vmatpush1.msra.mxu0 0.0
    %1036 = vmatprep.subr.mxu0 0.0
    %1037 = vmatpush1.msra.mxu0 0.0
    %1038 = vmatprep.subr.mxu0 0.0
    %1039 = vmatpush1.msra.mxu0 0.0
    %1040 = vmatprep.subr.mxu0 0.0
    %1041 = vmatpush1.msra.mxu0 0.0
    %1042 = vmatprep.subr.mxu0 0.0
    %1043 = vmatpush1.msra.mxu0 0.0
    %1044 = vmatprep.subr.mxu0 0.0
    %1045 = vmatpush1.msra.mxu0 %v1009
    %1046 = vmatprep.subr.mxu0 0.0
    %1047 = vmatpush1.msra.mxu0 %v1008
    %1048 = vmatprep.subr.mxu0 0.0
    %1049 = vmatpush2.msra.mxu0 0.0
    %1050 = vmatprep.subr.mxu0 0.0
    %1051 = vmatpush2.msra.mxu0 0.0
    %1052 = vmatprep.subr.mxu0 0.0
    %1053 = vmatpush2.msra.mxu0 0.0
    %1054 = vmatprep.subr.mxu0 0.0
    %1055 = vmatpush2.msra.mxu0 0.0
    %1056 = vmatprep.subr.mxu0 0.0
    %1057 = vmatpush2.msra.mxu0 0.0
    %1058 = vmatprep.subr.mxu0 0.0
    %1059 = vmatpush2.msra.mxu0 0.0
    %1060 = vmatprep.subr.mxu0 0.0
    %1061 = vmatpush2.msra.mxu0 0.0
    %1062 = vmatprep.subr.mxu0 0.0
    %1063 = vmatpush2.msra.mxu0 0.0
    %1064 = vmatprep.subr.mxu0 0.0
    %1065 = vmatpush2.msra.mxu0 0.0
    %1066 = vmatprep.subr.mxu0 0.0
    %1067 = vmatpush2.msra.mxu0 0.0
    %1068 = vmatprep.subr.mxu0 0.0
    %1069 = vmatpush2.msra.mxu0 0.0
    %1070 = vmatprep.subr.mxu0 0.0
    %1071 = vmatpush2.msra.mxu0 0.0
    %1072 = vmatprep.subr.mxu0 0.0
    %1073 = vmatpush2.msra.mxu0 0.0
    %1074 = vmatprep.subr.mxu0 0.0
    %1075 = vmatpush2.msra.mxu0 0.0
    %1076 = vmatprep.subr.mxu0 0.0
    %1077 = vmatpush2.msra.mxu0 0.0
    %1078 = vmatprep.subr.mxu0 0.0
    %1079 = vmatpush2.msra.mxu0 0.0
    %1080 = vmatprep.mubr.f32.mxu0 0.0
    %1081 = vmatmul.mubr.f32.gmra.mxu0 %v1011
    %v1082 = vpop.f32.mrf.mxu0
    %v1083 = vadd.f32 0.0, %v1082
    %v1084 = vpop.f32.mrf.mxu0
    %1085 = vmatprep.mubr.f32.mxu0 0.0
    %1086 = vmatmul.mubr.f32.gmra.mxu0 %v1014
    %v1087 = vpop.f32.mrf.mxu0
    %v1088 = vadd.f32 0.0, %v1087
    %v1089 = vpop.f32.mrf.mxu0
    %1090 = vdwg.mxu0
    %s1091 = sld [smem:[#allocation3 + $0xb]]
    %s1092 = smul.u32 %s1091, 16
    %s1093 = scalar_lea.vmem [#allocation4], %s1092
    %v1094 = vld [vmem:[%s1093] sm:$0xff]
    %v1095 = vld [vmem:[%s1093 + $0x8] sm:$0xff]
    %s1096 = scalar_lea.vmem [#allocation7], 176
    %v1097 = vld [vmem:[%s1096] sm:$0xff]
    %v1098 = vld [vmem:[%s1096 + $0x8] sm:$0xff]
    %v1100 = vsel %vm52, %v1094, 0
    %v1103 = vsel %vm52, %v1095, 0
    %1105 = vmatprep.subr.mxu0 0.0
    %1106 = vmatpush1.msra.mxu0 0.0
    %1107 = vmatprep.subr.mxu0 0.0
    %1108 = vmatpush1.msra.mxu0 0.0
    %1109 = vmatprep.subr.mxu0 0.0
    %1110 = vmatpush1.msra.mxu0 0.0
    %1111 = vmatprep.subr.mxu0 0.0
    %1112 = vmatpush1.msra.mxu0 0.0
    %1113 = vmatprep.subr.mxu0 0.0
    %1114 = vmatpush1.msra.mxu0 0.0
    %1115 = vmatprep.subr.mxu0 0.0
    %1116 = vmatpush1.msra.mxu0 0.0
    %1117 = vmatprep.subr.mxu0 0.0
    %1118 = vmatpush1.msra.mxu0 0.0
    %1119 = vmatprep.subr.mxu0 0.0
    %1120 = vmatpush1.msra.mxu0 0.0
    %1121 = vmatprep.subr.mxu0 0.0
    %1122 = vmatpush1.msra.mxu0 0.0
    %1123 = vmatprep.subr.mxu0 0.0
    %1124 = vmatpush1.msra.mxu0 0.0
    %1125 = vmatprep.subr.mxu0 0.0
    %1126 = vmatpush1.msra.mxu0 0.0
    %1127 = vmatprep.subr.mxu0 0.0
    %1128 = vmatpush1.msra.mxu0 0.0
    %1129 = vmatprep.subr.mxu0 0.0
    %1130 = vmatpush1.msra.mxu0 0.0
    %1131 = vmatprep.subr.mxu0 0.0
    %1132 = vmatpush1.msra.mxu0 0.0
    %1133 = vmatprep.subr.mxu0 0.0
    %1134 = vmatpush1.msra.mxu0 %v1098
    %1135 = vmatprep.subr.mxu0 0.0
    %1136 = vmatpush1.msra.mxu0 %v1097
    %1137 = vmatprep.subr.mxu0 0.0
    %1138 = vmatpush2.msra.mxu0 0.0
    %1139 = vmatprep.subr.mxu0 0.0
    %1140 = vmatpush2.msra.mxu0 0.0
    %1141 = vmatprep.subr.mxu0 0.0
    %1142 = vmatpush2.msra.mxu0 0.0
    %1143 = vmatprep.subr.mxu0 0.0
    %1144 = vmatpush2.msra.mxu0 0.0
    %1145 = vmatprep.subr.mxu0 0.0
    %1146 = vmatpush2.msra.mxu0 0.0
    %1147 = vmatprep.subr.mxu0 0.0
    %1148 = vmatpush2.msra.mxu0 0.0
    %1149 = vmatprep.subr.mxu0 0.0
    %1150 = vmatpush2.msra.mxu0 0.0
    %1151 = vmatprep.subr.mxu0 0.0
    %1152 = vmatpush2.msra.mxu0 0.0
    %1153 = vmatprep.subr.mxu0 0.0
    %1154 = vmatpush2.msra.mxu0 0.0
    %1155 = vmatprep.subr.mxu0 0.0
    %1156 = vmatpush2.msra.mxu0 0.0
    %1157 = vmatprep.subr.mxu0 0.0
    %1158 = vmatpush2.msra.mxu0 0.0
    %1159 = vmatprep.subr.mxu0 0.0
    %1160 = vmatpush2.msra.mxu0 0.0
    %1161 = vmatprep.subr.mxu0 0.0
    %1162 = vmatpush2.msra.mxu0 0.0
    %1163 = vmatprep.subr.mxu0 0.0
    %1164 = vmatpush2.msra.mxu0 0.0
    %1165 = vmatprep.subr.mxu0 0.0
    %1166 = vmatpush2.msra.mxu0 0.0
    %1167 = vmatprep.subr.mxu0 0.0
    %1168 = vmatpush2.msra.mxu0 0.0
    %1169 = vmatprep.mubr.f32.mxu0 0.0
    %1170 = vmatmul.mubr.f32.gmra.mxu0 %v1100
    %v1171 = vpop.f32.mrf.mxu0
    %v1172 = vadd.f32 0.0, %v1171
    %v1173 = vpop.f32.mrf.mxu0
    %1174 = vmatprep.mubr.f32.mxu0 0.0
    %1175 = vmatmul.mubr.f32.gmra.mxu0 %v1103
    %v1176 = vpop.f32.mrf.mxu0
    %v1177 = vadd.f32 0.0, %v1176
    %v1178 = vpop.f32.mrf.mxu0
    %1179 = vdwg.mxu0
    %1182 = vrot.lane.b32.xlu0 %v994, 32
    %v1183 = vpop.permute.xlu0 %1182
    %1184 = vrot.lane.b32.xlu0 %v999, 32
    %v1185 = vpop.permute.xlu0 %1184
    %1190 = vrot.lane.b32.xlu0 %v1083, 64
    %v1191 = vpop.permute.xlu0 %1190
    %1192 = vrot.lane.b32.xlu0 %v1088, 64
    %v1193 = vpop.permute.xlu0 %1192
    %1198 = vrot.lane.b32.xlu0 %v1172, 96
    %v1199 = vpop.permute.xlu0 %1198
    %1200 = vrot.lane.b32.xlu0 %v1177, 96
    %v1201 = vpop.permute.xlu0 %1200
    %v1204 = vsel %vm425, %v905, %v1183
    %v1205 = vsel %vm425, %v910, %v1185
    %v1206 = vsel %vm428, %v1204, %v1191
    %v1207 = vsel %vm428, %v1205, %v1193
    %v1208 = vsel %vm431, %v1206, %v1199
    %v1209 = vsel %vm431, %v1207, %v1201
    %1210 = vst [vmem:[#allocation9 + $0x10] sm:$0xff] %v1208
    %1211 = vst [vmem:[#allocation9 + $0x28] sm:$0xff] %v1209
    %s1212 = sld [smem:[#allocation3 + $0x80]]
    %s1213 = smul.u32 %s1212, 16
    %s1214 = sadd.s32 %s1213, 192
    %s1215 = scalar_lea.vmem [#allocation4], %s1214
    %v1216 = vld [vmem:[%s1215] sm:$0xff]
    %v1217 = vld [vmem:[%s1215 + $0x8] sm:$0xff]
    %s1218 = scalar_lea.vmem [#allocation7], 192
    %v1219 = vld [vmem:[%s1218] sm:$0xff]
    %v1220 = vld [vmem:[%s1218 + $0x8] sm:$0xff]
    %v1222 = vsel %vm52, %v1216, 0
    %v1225 = vsel %vm52, %v1217, 0
    %1227 = vmatprep.subr.mxu0 0.0
    %1228 = vmatpush1.msra.mxu0 0.0
    %1229 = vmatprep.subr.mxu0 0.0
    %1230 = vmatpush1.msra.mxu0 0.0
    %1231 = vmatprep.subr.mxu0 0.0
    %1232 = vmatpush1.msra.mxu0 0.0
    %1233 = vmatprep.subr.mxu0 0.0
    %1234 = vmatpush1.msra.mxu0 0.0
    %1235 = vmatprep.subr.mxu0 0.0
    %1236 = vmatpush1.msra.mxu0 0.0
    %1237 = vmatprep.subr.mxu0 0.0
    %1238 = vmatpush1.msra.mxu0 0.0
    %1239 = vmatprep.subr.mxu0 0.0
    %1240 = vmatpush1.msra.mxu0 0.0
    %1241 = vmatprep.subr.mxu0 0.0
    %1242 = vmatpush1.msra.mxu0 0.0
    %1243 = vmatprep.subr.mxu0 0.0
    %1244 = vmatpush1.msra.mxu0 0.0
    %1245 = vmatprep.subr.mxu0 0.0
    %1246 = vmatpush1.msra.mxu0 0.0
    %1247 = vmatprep.subr.mxu0 0.0
    %1248 = vmatpush1.msra.mxu0 0.0
    %1249 = vmatprep.subr.mxu0 0.0
    %1250 = vmatpush1.msra.mxu0 0.0
    %1251 = vmatprep.subr.mxu0 0.0
    %1252 = vmatpush1.msra.mxu0 0.0
    %1253 = vmatprep.subr.mxu0 0.0
    %1254 = vmatpush1.msra.mxu0 0.0
    %1255 = vmatprep.subr.mxu0 0.0
    %1256 = vmatpush1.msra.mxu0 %v1220
    %1257 = vmatprep.subr.mxu0 0.0
    %1258 = vmatpush1.msra.mxu0 %v1219
    %1259 = vmatprep.subr.mxu0 0.0
    %1260 = vmatpush2.msra.mxu0 0.0
    %1261 = vmatprep.subr.mxu0 0.0
    %1262 = vmatpush2.msra.mxu0 0.0
    %1263 = vmatprep.subr.mxu0 0.0
    %1264 = vmatpush2.msra.mxu0 0.0
    %1265 = vmatprep.subr.mxu0 0.0
    %1266 = vmatpush2.msra.mxu0 0.0
    %1267 = vmatprep.subr.mxu0 0.0
    %1268 = vmatpush2.msra.mxu0 0.0
    %1269 = vmatprep.subr.mxu0 0.0
    %1270 = vmatpush2.msra.mxu0 0.0
    %1271 = vmatprep.subr.mxu0 0.0
    %1272 = vmatpush2.msra.mxu0 0.0
    %1273 = vmatprep.subr.mxu0 0.0
    %1274 = vmatpush2.msra.mxu0 0.0
    %1275 = vmatprep.subr.mxu0 0.0
    %1276 = vmatpush2.msra.mxu0 0.0
    %1277 = vmatprep.subr.mxu0 0.0
    %1278 = vmatpush2.msra.mxu0 0.0
    %1279 = vmatprep.subr.mxu0 0.0
    %1280 = vmatpush2.msra.mxu0 0.0
    %1281 = vmatprep.subr.mxu0 0.0
    %1282 = vmatpush2.msra.mxu0 0.0
    %1283 = vmatprep.subr.mxu0 0.0
    %1284 = vmatpush2.msra.mxu0 0.0
    %1285 = vmatprep.subr.mxu0 0.0
    %1286 = vmatpush2.msra.mxu0 0.0
    %1287 = vmatprep.subr.mxu0 0.0
    %1288 = vmatpush2.msra.mxu0 0.0
    %1289 = vmatprep.subr.mxu0 0.0
    %1290 = vmatpush2.msra.mxu0 0.0
    %1291 = vmatprep.mubr.f32.mxu0 0.0
    %1292 = vmatmul.mubr.f32.gmra.mxu0 %v1222
    %v1293 = vpop.f32.mrf.mxu0
    %v1294 = vadd.f32 0.0, %v1293
    %v1295 = vpop.f32.mrf.mxu0
    %1296 = vmatprep.mubr.f32.mxu0 0.0
    %1297 = vmatmul.mubr.f32.gmra.mxu0 %v1225
    %v1298 = vpop.f32.mrf.mxu0
    %v1299 = vadd.f32 0.0, %v1298
    %v1300 = vpop.f32.mrf.mxu0
    %1301 = vdwg.mxu0
    %s1302 = sld [smem:[#allocation3 + $0x81]]
    %s1303 = smul.u32 %s1302, 16
    %s1304 = sadd.s32 %s1303, 192
    %s1305 = scalar_lea.vmem [#allocation4], %s1304
    %v1306 = vld [vmem:[%s1305] sm:$0xff]
    %v1307 = vld [vmem:[%s1305 + $0x8] sm:$0xff]
    %s1308 = scalar_lea.vmem [#allocation7], 208
    %v1309 = vld [vmem:[%s1308] sm:$0xff]
    %v1310 = vld [vmem:[%s1308 + $0x8] sm:$0xff]
    %v1312 = vsel %vm52, %v1306, 0
    %v1315 = vsel %vm52, %v1307, 0
    %1317 = vmatprep.subr.mxu0 0.0
    %1318 = vmatpush1.msra.mxu0 0.0
    %1319 = vmatprep.subr.mxu0 0.0
    %1320 = vmatpush1.msra.mxu0 0.0
    %1321 = vmatprep.subr.mxu0 0.0
    %1322 = vmatpush1.msra.mxu0 0.0
    %1323 = vmatprep.subr.mxu0 0.0
    %1324 = vmatpush1.msra.mxu0 0.0
    %1325 = vmatprep.subr.mxu0 0.0
    %1326 = vmatpush1.msra.mxu0 0.0
    %1327 = vmatprep.subr.mxu0 0.0
    %1328 = vmatpush1.msra.mxu0 0.0
    %1329 = vmatprep.subr.mxu0 0.0
    %1330 = vmatpush1.msra.mxu0 0.0
    %1331 = vmatprep.subr.mxu0 0.0
    %1332 = vmatpush1.msra.mxu0 0.0
    %1333 = vmatprep.subr.mxu0 0.0
    %1334 = vmatpush1.msra.mxu0 0.0
    %1335 = vmatprep.subr.mxu0 0.0
    %1336 = vmatpush1.msra.mxu0 0.0
    %1337 = vmatprep.subr.mxu0 0.0
    %1338 = vmatpush1.msra.mxu0 0.0
    %1339 = vmatprep.subr.mxu0 0.0
    %1340 = vmatpush1.msra.mxu0 0.0
    %1341 = vmatprep.subr.mxu0 0.0
    %1342 = vmatpush1.msra.mxu0 0.0
    %1343 = vmatprep.subr.mxu0 0.0
    %1344 = vmatpush1.msra.mxu0 0.0
    %1345 = vmatprep.subr.mxu0 0.0
    %1346 = vmatpush1.msra.mxu0 %v1310
    %1347 = vmatprep.subr.mxu0 0.0
    %1348 = vmatpush1.msra.mxu0 %v1309
    %1349 = vmatprep.subr.mxu0 0.0
    %1350 = vmatpush2.msra.mxu0 0.0
    %1351 = vmatprep.subr.mxu0 0.0
    %1352 = vmatpush2.msra.mxu0 0.0
    %1353 = vmatprep.subr.mxu0 0.0
    %1354 = vmatpush2.msra.mxu0 0.0
    %1355 = vmatprep.subr.mxu0 0.0
    %1356 = vmatpush2.msra.mxu0 0.0
    %1357 = vmatprep.subr.mxu0 0.0
    %1358 = vmatpush2.msra.mxu0 0.0
    %1359 = vmatprep.subr.mxu0 0.0
    %1360 = vmatpush2.msra.mxu0 0.0
    %1361 = vmatprep.subr.mxu0 0.0
    %1362 = vmatpush2.msra.mxu0 0.0
    %1363 = vmatprep.subr.mxu0 0.0
    %1364 = vmatpush2.msra.mxu0 0.0
    %1365 = vmatprep.subr.mxu0 0.0
    %1366 = vmatpush2.msra.mxu0 0.0
    %1367 = vmatprep.subr.mxu0 0.0
    %1368 = vmatpush2.msra.mxu0 0.0
    %1369 = vmatprep.subr.mxu0 0.0
    %1370 = vmatpush2.msra.mxu0 0.0
    %1371 = vmatprep.subr.mxu0 0.0
    %1372 = vmatpush2.msra.mxu0 0.0
    %1373 = vmatprep.subr.mxu0 0.0
    %1374 = vmatpush2.msra.mxu0 0.0
    %1375 = vmatprep.subr.mxu0 0.0
    %1376 = vmatpush2.msra.mxu0 0.0
    %1377 = vmatprep.subr.mxu0 0.0
    %1378 = vmatpush2.msra.mxu0 0.0
    %1379 = vmatprep.subr.mxu0 0.0
    %1380 = vmatpush2.msra.mxu0 0.0
    %1381 = vmatprep.mubr.f32.mxu0 0.0
    %1382 = vmatmul.mubr.f32.gmra.mxu0 %v1312
    %v1383 = vpop.f32.mrf.mxu0
    %v1384 = vadd.f32 0.0, %v1383
    %v1385 = vpop.f32.mrf.mxu0
    %1386 = vmatprep.mubr.f32.mxu0 0.0
    %1387 = vmatmul.mubr.f32.gmra.mxu0 %v1315
    %v1388 = vpop.f32.mrf.mxu0
    %v1389 = vadd.f32 0.0, %v1388
    %v1390 = vpop.f32.mrf.mxu0
    %1391 = vdwg.mxu0
    %s1392 = sld [smem:[#allocation3 + $0x82]]
    %s1393 = smul.u32 %s1392, 16
    %s1394 = sadd.s32 %s1393, 192
    %s1395 = scalar_lea.vmem [#allocation4], %s1394
    %v1396 = vld [vmem:[%s1395] sm:$0xff]
    %v1397 = vld [vmem:[%s1395 + $0x8] sm:$0xff]
    %s1398 = scalar_lea.vmem [#allocation7], 224
    %v1399 = vld [vmem:[%s1398] sm:$0xff]
    %v1400 = vld [vmem:[%s1398 + $0x8] sm:$0xff]
    %v1402 = vsel %vm52, %v1396, 0
    %v1405 = vsel %vm52, %v1397, 0
    %1407 = vmatprep.subr.mxu0 0.0
    %1408 = vmatpush1.msra.mxu0 0.0
    %1409 = vmatprep.subr.mxu0 0.0
    %1410 = vmatpush1.msra.mxu0 0.0
    %1411 = vmatprep.subr.mxu0 0.0
    %1412 = vmatpush1.msra.mxu0 0.0
    %1413 = vmatprep.subr.mxu0 0.0
    %1414 = vmatpush1.msra.mxu0 0.0
    %1415 = vmatprep.subr.mxu0 0.0
    %1416 = vmatpush1.msra.mxu0 0.0
    %1417 = vmatprep.subr.mxu0 0.0
    %1418 = vmatpush1.msra.mxu0 0.0
    %1419 = vmatprep.subr.mxu0 0.0
    %1420 = vmatpush1.msra.mxu0 0.0
    %1421 = vmatprep.subr.mxu0 0.0
    %1422 = vmatpush1.msra.mxu0 0.0
    %1423 = vmatprep.subr.mxu0 0.0
    %1424 = vmatpush1.msra.mxu0 0.0
    %1425 = vmatprep.subr.mxu0 0.0
    %1426 = vmatpush1.msra.mxu0 0.0
    %1427 = vmatprep.subr.mxu0 0.0
    %1428 = vmatpush1.msra.mxu0 0.0
    %1429 = vmatprep.subr.mxu0 0.0
    %1430 = vmatpush1.msra.mxu0 0.0
    %1431 = vmatprep.subr.mxu0 0.0
    %1432 = vmatpush1.msra.mxu0 0.0
    %1433 = vmatprep.subr.mxu0 0.0
    %1434 = vmatpush1.msra.mxu0 0.0
    %1435 = vmatprep.subr.mxu0 0.0
    %1436 = vmatpush1.msra.mxu0 %v1400
    %1437 = vmatprep.subr.mxu0 0.0
    %1438 = vmatpush1.msra.mxu0 %v1399
    %1439 = vmatprep.subr.mxu0 0.0
    %1440 = vmatpush2.msra.mxu0 0.0
    %1441 = vmatprep.subr.mxu0 0.0
    %1442 = vmatpush2.msra.mxu0 0.0
    %1443 = vmatprep.subr.mxu0 0.0
    %1444 = vmatpush2.msra.mxu0 0.0
    %1445 = vmatprep.subr.mxu0 0.0
    %1446 = vmatpush2.msra.mxu0 0.0
    %1447 = vmatprep.subr.mxu0 0.0
    %1448 = vmatpush2.msra.mxu0 0.0
    %1449 = vmatprep.subr.mxu0 0.0
    %1450 = vmatpush2.msra.mxu0 0.0
    %1451 = vmatprep.subr.mxu0 0.0
    %1452 = vmatpush2.msra.mxu0 0.0
    %1453 = vmatprep.subr.mxu0 0.0
    %1454 = vmatpush2.msra.mxu0 0.0
    %1455 = vmatprep.subr.mxu0 0.0
    %1456 = vmatpush2.msra.mxu0 0.0
    %1457 = vmatprep.subr.mxu0 0.0
    %1458 = vmatpush2.msra.mxu0 0.0
    %1459 = vmatprep.subr.mxu0 0.0
    %1460 = vmatpush2.msra.mxu0 0.0
    %1461 = vmatprep.subr.mxu0 0.0
    %1462 = vmatpush2.msra.mxu0 0.0
    %1463 = vmatprep.subr.mxu0 0.0
    %1464 = vmatpush2.msra.mxu0 0.0
    %1465 = vmatprep.subr.mxu0 0.0
    %1466 = vmatpush2.msra.mxu0 0.0
    %1467 = vmatprep.subr.mxu0 0.0
    %1468 = vmatpush2.msra.mxu0 0.0
    %1469 = vmatprep.subr.mxu0 0.0
    %1470 = vmatpush2.msra.mxu0 0.0
    %1471 = vmatprep.mubr.f32.mxu0 0.0
    %1472 = vmatmul.mubr.f32.gmra.mxu0 %v1402
    %v1473 = vpop.f32.mrf.mxu0
    %v1474 = vadd.f32 0.0, %v1473
    %v1475 = vpop.f32.mrf.mxu0
    %1476 = vmatprep.mubr.f32.mxu0 0.0
    %1477 = vmatmul.mubr.f32.gmra.mxu0 %v1405
    %v1478 = vpop.f32.mrf.mxu0
    %v1479 = vadd.f32 0.0, %v1478
    %v1480 = vpop.f32.mrf.mxu0
    %1481 = vdwg.mxu0
    %s1482 = sld [smem:[#allocation3 + $0x83]]
    %s1483 = smul.u32 %s1482, 16
    %s1484 = sadd.s32 %s1483, 192
    %s1485 = scalar_lea.vmem [#allocation4], %s1484
    %v1486 = vld [vmem:[%s1485] sm:$0xff]
    %v1487 = vld [vmem:[%s1485 + $0x8] sm:$0xff]
    %s1488 = scalar_lea.vmem [#allocation7], 240
    %v1489 = vld [vmem:[%s1488] sm:$0xff]
    %v1490 = vld [vmem:[%s1488 + $0x8] sm:$0xff]
    %v1492 = vsel %vm52, %v1486, 0
    %v1495 = vsel %vm52, %v1487, 0
    %1497 = vmatprep.subr.mxu0 0.0
    %1498 = vmatpush1.msra.mxu0 0.0
    %1499 = vmatprep.subr.mxu0 0.0
    %1500 = vmatpush1.msra.mxu0 0.0
    %1501 = vmatprep.subr.mxu0 0.0
    %1502 = vmatpush1.msra.mxu0 0.0
    %1503 = vmatprep.subr.mxu0 0.0
    %1504 = vmatpush1.msra.mxu0 0.0
    %1505 = vmatprep.subr.mxu0 0.0
    %1506 = vmatpush1.msra.mxu0 0.0
    %1507 = vmatprep.subr.mxu0 0.0
    %1508 = vmatpush1.msra.mxu0 0.0
    %1509 = vmatprep.subr.mxu0 0.0
    %1510 = vmatpush1.msra.mxu0 0.0
    %1511 = vmatprep.subr.mxu0 0.0
    %1512 = vmatpush1.msra.mxu0 0.0
    %1513 = vmatprep.subr.mxu0 0.0
    %1514 = vmatpush1.msra.mxu0 0.0
    %1515 = vmatprep.subr.mxu0 0.0
    %1516 = vmatpush1.msra.mxu0 0.0
    %1517 = vmatprep.subr.mxu0 0.0
    %1518 = vmatpush1.msra.mxu0 0.0
    %1519 = vmatprep.subr.mxu0 0.0
    %1520 = vmatpush1.msra.mxu0 0.0
    %1521 = vmatprep.subr.mxu0 0.0
    %1522 = vmatpush1.msra.mxu0 0.0
    %1523 = vmatprep.subr.mxu0 0.0
    %1524 = vmatpush1.msra.mxu0 0.0
    %1525 = vmatprep.subr.mxu0 0.0
    %1526 = vmatpush1.msra.mxu0 %v1490
    %1527 = vmatprep.subr.mxu0 0.0
    %1528 = vmatpush1.msra.mxu0 %v1489
    %1529 = vmatprep.subr.mxu0 0.0
    %1530 = vmatpush2.msra.mxu0 0.0
    %1531 = vmatprep.subr.mxu0 0.0
    %1532 = vmatpush2.msra.mxu0 0.0
    %1533 = vmatprep.subr.mxu0 0.0
    %1534 = vmatpush2.msra.mxu0 0.0
    %1535 = vmatprep.subr.mxu0 0.0
    %1536 = vmatpush2.msra.mxu0 0.0
    %1537 = vmatprep.subr.mxu0 0.0
    %1538 = vmatpush2.msra.mxu0 0.0
    %1539 = vmatprep.subr.mxu0 0.0
    %1540 = vmatpush2.msra.mxu0 0.0
    %1541 = vmatprep.subr.mxu0 0.0
    %1542 = vmatpush2.msra.mxu0 0.0
    %1543 = vmatprep.subr.mxu0 0.0
    %1544 = vmatpush2.msra.mxu0 0.0
    %1545 = vmatprep.subr.mxu0 0.0
    %1546 = vmatpush2.msra.mxu0 0.0
    %1547 = vmatprep.subr.mxu0 0.0
    %1548 = vmatpush2.msra.mxu0 0.0
    %1549 = vmatprep.subr.mxu0 0.0
    %1550 = vmatpush2.msra.mxu0 0.0
    %1551 = vmatprep.subr.mxu0 0.0
    %1552 = vmatpush2.msra.mxu0 0.0
    %1553 = vmatprep.subr.mxu0 0.0
    %1554 = vmatpush2.msra.mxu0 0.0
    %1555 = vmatprep.subr.mxu0 0.0
    %1556 = vmatpush2.msra.mxu0 0.0
    %1557 = vmatprep.subr.mxu0 0.0
    %1558 = vmatpush2.msra.mxu0 0.0
    %1559 = vmatprep.subr.mxu0 0.0
    %1560 = vmatpush2.msra.mxu0 0.0
    %1561 = vmatprep.mubr.f32.mxu0 0.0
    %1562 = vmatmul.mubr.f32.gmra.mxu0 %v1492
    %v1563 = vpop.f32.mrf.mxu0
    %v1564 = vadd.f32 0.0, %v1563
    %v1565 = vpop.f32.mrf.mxu0
    %1566 = vmatprep.mubr.f32.mxu0 0.0
    %1567 = vmatmul.mubr.f32.gmra.mxu0 %v1495
    %v1568 = vpop.f32.mrf.mxu0
    %v1569 = vadd.f32 0.0, %v1568
    %v1570 = vpop.f32.mrf.mxu0
    %1571 = vdwg.mxu0
    %1574 = vrot.lane.b32.xlu0 %v1384, 32
    %v1575 = vpop.permute.xlu0 %1574
    %1576 = vrot.lane.b32.xlu0 %v1389, 32
    %v1577 = vpop.permute.xlu0 %1576
    %1582 = vrot.lane.b32.xlu0 %v1474, 64
    %v1583 = vpop.permute.xlu0 %1582
    %1584 = vrot.lane.b32.xlu0 %v1479, 64
    %v1585 = vpop.permute.xlu0 %1584
    %1590 = vrot.lane.b32.xlu0 %v1564, 96
    %v1591 = vpop.permute.xlu0 %1590
    %1592 = vrot.lane.b32.xlu0 %v1569, 96
    %v1593 = vpop.permute.xlu0 %1592
    %v1596 = vsel %vm425, %v1294, %v1575
    %v1597 = vsel %vm425, %v1299, %v1577
    %v1598 = vsel %vm428, %v1596, %v1583
    %v1599 = vsel %vm428, %v1597, %v1585
    %v1600 = vsel %vm431, %v1598, %v1591
    %v1601 = vsel %vm431, %v1599, %v1593
    %s1602 = scalar_lea.vmem [#allocation9], 48
    %1603 = vst [vmem:[%s1602] sm:$0xff] %v1600
    %1604 = vst [vmem:[%s1602 + $0x18] sm:$0xff] %v1601
    %s1605 = sld [smem:[#allocation3 + $0x84]]
    %s1606 = smul.u32 %s1605, 16
    %s1607 = sadd.s32 %s1606, 192
    %s1608 = scalar_lea.vmem [#allocation4], %s1607
    %v1609 = vld [vmem:[%s1608] sm:$0xff]
    %v1610 = vld [vmem:[%s1608 + $0x8] sm:$0xff]
    %s1611 = scalar_lea.vmem [#allocation7], 256
    %v1612 = vld [vmem:[%s1611] sm:$0xff]
    %v1613 = vld [vmem:[%s1611 + $0x8] sm:$0xff]
    %v1615 = vsel %vm52, %v1609, 0
    %v1618 = vsel %vm52, %v1610, 0
    %1620 = vmatprep.subr.mxu0 0.0
    %1621 = vmatpush1.msra.mxu0 0.0
    %1622 = vmatprep.subr.mxu0 0.0
    %1623 = vmatpush1.msra.mxu0 0.0
    %1624 = vmatprep.subr.mxu0 0.0
    %1625 = vmatpush1.msra.mxu0 0.0
    %1626 = vmatprep.subr.mxu0 0.0
    %1627 = vmatpush1.msra.mxu0 0.0
    %1628 = vmatprep.subr.mxu0 0.0
    %1629 = vmatpush1.msra.mxu0 0.0
    %1630 = vmatprep.subr.mxu0 0.0
    %1631 = vmatpush1.msra.mxu0 0.0
    %1632 = vmatprep.subr.mxu0 0.0
    %1633 = vmatpush1.msra.mxu0 0.0
    %1634 = vmatprep.subr.mxu0 0.0
    %1635 = vmatpush1.msra.mxu0 0.0
    %1636 = vmatprep.subr.mxu0 0.0
    %1637 = vmatpush1.msra.mxu0 0.0
    %1638 = vmatprep.subr.mxu0 0.0
    %1639 = vmatpush1.msra.mxu0 0.0
    %1640 = vmatprep.subr.mxu0 0.0
    %1641 = vmatpush1.msra.mxu0 0.0
    %1642 = vmatprep.subr.mxu0 0.0
    %1643 = vmatpush1.msra.mxu0 0.0
    %1644 = vmatprep.subr.mxu0 0.0
    %1645 = vmatpush1.msra.mxu0 0.0
    %1646 = vmatprep.subr.mxu0 0.0
    %1647 = vmatpush1.msra.mxu0 0.0
    %1648 = vmatprep.subr.mxu0 0.0
    %1649 = vmatpush1.msra.mxu0 %v1613
    %1650 = vmatprep.subr.mxu0 0.0
    %1651 = vmatpush1.msra.mxu0 %v1612
    %1652 = vmatprep.subr.mxu0 0.0
    %1653 = vmatpush2.msra.mxu0 0.0
    %1654 = vmatprep.subr.mxu0 0.0
    %1655 = vmatpush2.msra.mxu0 0.0
    %1656 = vmatprep.subr.mxu0 0.0
    %1657 = vmatpush2.msra.mxu0 0.0
    %1658 = vmatprep.subr.mxu0 0.0
    %1659 = vmatpush2.msra.mxu0 0.0
    %1660 = vmatprep.subr.mxu0 0.0
    %1661 = vmatpush2.msra.mxu0 0.0
    %1662 = vmatprep.subr.mxu0 0.0
    %1663 = vmatpush2.msra.mxu0 0.0
    %1664 = vmatprep.subr.mxu0 0.0
    %1665 = vmatpush2.msra.mxu0 0.0
    %1666 = vmatprep.subr.mxu0 0.0
    %1667 = vmatpush2.msra.mxu0 0.0
    %1668 = vmatprep.subr.mxu0 0.0
    %1669 = vmatpush2.msra.mxu0 0.0
    %1670 = vmatprep.subr.mxu0 0.0
    %1671 = vmatpush2.msra.mxu0 0.0
    %1672 = vmatprep.subr.mxu0 0.0
    %1673 = vmatpush2.msra.mxu0 0.0
    %1674 = vmatprep.subr.mxu0 0.0
    %1675 = vmatpush2.msra.mxu0 0.0
    %1676 = vmatprep.subr.mxu0 0.0
    %1677 = vmatpush2.msra.mxu0 0.0
    %1678 = vmatprep.subr.mxu0 0.0
    %1679 = vmatpush2.msra.mxu0 0.0
    %1680 = vmatprep.subr.mxu0 0.0
    %1681 = vmatpush2.msra.mxu0 0.0
    %1682 = vmatprep.subr.mxu0 0.0
    %1683 = vmatpush2.msra.mxu0 0.0
    %1684 = vmatprep.mubr.f32.mxu0 0.0
    %1685 = vmatmul.mubr.f32.gmra.mxu0 %v1615
    %v1686 = vpop.f32.mrf.mxu0
    %v1687 = vadd.f32 0.0, %v1686
    %v1688 = vpop.f32.mrf.mxu0
    %1689 = vmatprep.mubr.f32.mxu0 0.0
    %1690 = vmatmul.mubr.f32.gmra.mxu0 %v1618
    %v1691 = vpop.f32.mrf.mxu0
    %v1692 = vadd.f32 0.0, %v1691
    %v1693 = vpop.f32.mrf.mxu0
    %1694 = vdwg.mxu0
    %s1695 = sld [smem:[#allocation3 + $0x85]]
    %s1696 = smul.u32 %s1695, 16
    %s1697 = sadd.s32 %s1696, 192
    %s1698 = scalar_lea.vmem [#allocation4], %s1697
    %v1699 = vld [vmem:[%s1698] sm:$0xff]
    %v1700 = vld [vmem:[%s1698 + $0x8] sm:$0xff]
    %s1701 = scalar_lea.vmem [#allocation7], 272
    %v1702 = vld [vmem:[%s1701] sm:$0xff]
    %v1703 = vld [vmem:[%s1701 + $0x8] sm:$0xff]
    %v1705 = vsel %vm52, %v1699, 0
    %v1708 = vsel %vm52, %v1700, 0
    %1710 = vmatprep.subr.mxu0 0.0
    %1711 = vmatpush1.msra.mxu0 0.0
    %1712 = vmatprep.subr.mxu0 0.0
    %1713 = vmatpush1.msra.mxu0 0.0
    %1714 = vmatprep.subr.mxu0 0.0
    %1715 = vmatpush1.msra.mxu0 0.0
    %1716 = vmatprep.subr.mxu0 0.0
    %1717 = vmatpush1.msra.mxu0 0.0
    %1718 = vmatprep.subr.mxu0 0.0
    %1719 = vmatpush1.msra.mxu0 0.0
    %1720 = vmatprep.subr.mxu0 0.0
    %1721 = vmatpush1.msra.mxu0 0.0
    %1722 = vmatprep.subr.mxu0 0.0
    %1723 = vmatpush1.msra.mxu0 0.0
    %1724 = vmatprep.subr.mxu0 0.0
    %1725 = vmatpush1.msra.mxu0 0.0
    %1726 = vmatprep.subr.mxu0 0.0
    %1727 = vmatpush1.msra.mxu0 0.0
    %1728 = vmatprep.subr.mxu0 0.0
    %1729 = vmatpush1.msra.mxu0 0.0
    %1730 = vmatprep.subr.mxu0 0.0
    %1731 = vmatpush1.msra.mxu0 0.0
    %1732 = vmatprep.subr.mxu0 0.0
    %1733 = vmatpush1.msra.mxu0 0.0
    %1734 = vmatprep.subr.mxu0 0.0
    %1735 = vmatpush1.msra.mxu0 0.0
    %1736 = vmatprep.subr.mxu0 0.0
    %1737 = vmatpush1.msra.mxu0 0.0
    %1738 = vmatprep.subr.mxu0 0.0
    %1739 = vmatpush1.msra.mxu0 %v1703
    %1740 = vmatprep.subr.mxu0 0.0
    %1741 = vmatpush1.msra.mxu0 %v1702
    %1742 = vmatprep.subr.mxu0 0.0
    %1743 = vmatpush2.msra.mxu0 0.0
    %1744 = vmatprep.subr.mxu0 0.0
    %1745 = vmatpush2.msra.mxu0 0.0
    %1746 = vmatprep.subr.mxu0 0.0
    %1747 = vmatpush2.msra.mxu0 0.0
    %1748 = vmatprep.subr.mxu0 0.0
    %1749 = vmatpush2.msra.mxu0 0.0
    %1750 = vmatprep.subr.mxu0 0.0
    %1751 = vmatpush2.msra.mxu0 0.0
    %1752 = vmatprep.subr.mxu0 0.0
    %1753 = vmatpush2.msra.mxu0 0.0
    %1754 = vmatprep.subr.mxu0 0.0
    %1755 = vmatpush2.msra.mxu0 0.0
    %1756 = vmatprep.subr.mxu0 0.0
    %1757 = vmatpush2.msra.mxu0 0.0
    %1758 = vmatprep.subr.mxu0 0.0
    %1759 = vmatpush2.msra.mxu0 0.0
    %1760 = vmatprep.subr.mxu0 0.0
    %1761 = vmatpush2.msra.mxu0 0.0
    %1762 = vmatprep.subr.mxu0 0.0
    %1763 = vmatpush2.msra.mxu0 0.0
    %1764 = vmatprep.subr.mxu0 0.0
    %1765 = vmatpush2.msra.mxu0 0.0
    %1766 = vmatprep.subr.mxu0 0.0
    %1767 = vmatpush2.msra.mxu0 0.0
    %1768 = vmatprep.subr.mxu0 0.0
    %1769 = vmatpush2.msra.mxu0 0.0
    %1770 = vmatprep.subr.mxu0 0.0
    %1771 = vmatpush2.msra.mxu0 0.0
    %1772 = vmatprep.subr.mxu0 0.0
    %1773 = vmatpush2.msra.mxu0 0.0
    %1774 = vmatprep.mubr.f32.mxu0 0.0
    %1775 = vmatmul.mubr.f32.gmra.mxu0 %v1705
    %v1776 = vpop.f32.mrf.mxu0
    %v1777 = vadd.f32 0.0, %v1776
    %v1778 = vpop.f32.mrf.mxu0
    %1779 = vmatprep.mubr.f32.mxu0 0.0
    %1780 = vmatmul.mubr.f32.gmra.mxu0 %v1708
    %v1781 = vpop.f32.mrf.mxu0
    %v1782 = vadd.f32 0.0, %v1781
    %v1783 = vpop.f32.mrf.mxu0
    %1784 = vdwg.mxu0
    %s1785 = sld [smem:[#allocation3 + $0x86]]
    %s1786 = smul.u32 %s1785, 16
    %s1787 = sadd.s32 %s1786, 192
    %s1788 = scalar_lea.vmem [#allocation4], %s1787
    %v1789 = vld [vmem:[%s1788] sm:$0xff]
    %v1790 = vld [vmem:[%s1788 + $0x8] sm:$0xff]
    %s1791 = scalar_lea.vmem [#allocation7], 288
    %v1792 = vld [vmem:[%s1791] sm:$0xff]
    %v1793 = vld [vmem:[%s1791 + $0x8] sm:$0xff]
    %v1795 = vsel %vm52, %v1789, 0
    %v1798 = vsel %vm52, %v1790, 0
    %1800 = vmatprep.subr.mxu0 0.0
    %1801 = vmatpush1.msra.mxu0 0.0
    %1802 = vmatprep.subr.mxu0 0.0
    %1803 = vmatpush1.msra.mxu0 0.0
    %1804 = vmatprep.subr.mxu0 0.0
    %1805 = vmatpush1.msra.mxu0 0.0
    %1806 = vmatprep.subr.mxu0 0.0
    %1807 = vmatpush1.msra.mxu0 0.0
    %1808 = vmatprep.subr.mxu0 0.0
    %1809 = vmatpush1.msra.mxu0 0.0
    %1810 = vmatprep.subr.mxu0 0.0
    %1811 = vmatpush1.msra.mxu0 0.0
    %1812 = vmatprep.subr.mxu0 0.0
    %1813 = vmatpush1.msra.mxu0 0.0
    %1814 = vmatprep.subr.mxu0 0.0
    %1815 = vmatpush1.msra.mxu0 0.0
    %1816 = vmatprep.subr.mxu0 0.0
    %1817 = vmatpush1.msra.mxu0 0.0
    %1818 = vmatprep.subr.mxu0 0.0
    %1819 = vmatpush1.msra.mxu0 0.0
    %1820 = vmatprep.subr.mxu0 0.0
    %1821 = vmatpush1.msra.mxu0 0.0
    %1822 = vmatprep.subr.mxu0 0.0
    %1823 = vmatpush1.msra.mxu0 0.0
    %1824 = vmatprep.subr.mxu0 0.0
    %1825 = vmatpush1.msra.mxu0 0.0
    %1826 = vmatprep.subr.mxu0 0.0
    %1827 = vmatpush1.msra.mxu0 0.0
    %1828 = vmatprep.subr.mxu0 0.0
    %1829 = vmatpush1.msra.mxu0 %v1793
    %1830 = vmatprep.subr.mxu0 0.0
    %1831 = vmatpush1.msra.mxu0 %v1792
    %1832 = vmatprep.subr.mxu0 0.0
    %1833 = vmatpush2.msra.mxu0 0.0
    %1834 = vmatprep.subr.mxu0 0.0
    %1835 = vmatpush2.msra.mxu0 0.0
    %1836 = vmatprep.subr.mxu0 0.0
    %1837 = vmatpush2.msra.mxu0 0.0
    %1838 = vmatprep.subr.mxu0 0.0
    %1839 = vmatpush2.msra.mxu0 0.0
    %1840 = vmatprep.subr.mxu0 0.0
    %1841 = vmatpush2.msra.mxu0 0.0
    %1842 = vmatprep.subr.mxu0 0.0
    %1843 = vmatpush2.msra.mxu0 0.0
    %1844 = vmatprep.subr.mxu0 0.0
    %1845 = vmatpush2.msra.mxu0 0.0
    %1846 = vmatprep.subr.mxu0 0.0
    %1847 = vmatpush2.msra.mxu0 0.0
    %1848 = vmatprep.subr.mxu0 0.0
    %1849 = vmatpush2.msra.mxu0 0.0
    %1850 = vmatprep.subr.mxu0 0.0
    %1851 = vmatpush2.msra.mxu0 0.0
    %1852 = vmatprep.subr.mxu0 0.0
    %1853 = vmatpush2.msra.mxu0 0.0
    %1854 = vmatprep.subr.mxu0 0.0
    %1855 = vmatpush2.msra.mxu0 0.0
    %1856 = vmatprep.subr.mxu0 0.0
    %1857 = vmatpush2.msra.mxu0 0.0
    %1858 = vmatprep.subr.mxu0 0.0
    %1859 = vmatpush2.msra.mxu0 0.0
    %1860 = vmatprep.subr.mxu0 0.0
    %1861 = vmatpush2.msra.mxu0 0.0
    %1862 = vmatprep.subr.mxu0 0.0
    %1863 = vmatpush2.msra.mxu0 0.0
    %1864 = vmatprep.mubr.f32.mxu0 0.0
    %1865 = vmatmul.mubr.f32.gmra.mxu0 %v1795
    %v1866 = vpop.f32.mrf.mxu0
    %v1867 = vadd.f32 0.0, %v1866
    %v1868 = vpop.f32.mrf.mxu0
    %1869 = vmatprep.mubr.f32.mxu0 0.0
    %1870 = vmatmul.mubr.f32.gmra.mxu0 %v1798
    %v1871 = vpop.f32.mrf.mxu0
    %v1872 = vadd.f32 0.0, %v1871
    %v1873 = vpop.f32.mrf.mxu0
    %1874 = vdwg.mxu0
    %s1875 = sld [smem:[#allocation3 + $0x87]]
    %s1876 = smul.u32 %s1875, 16
    %s1877 = sadd.s32 %s1876, 192
    %s1878 = scalar_lea.vmem [#allocation4], %s1877
    %v1879 = vld [vmem:[%s1878] sm:$0xff]
    %v1880 = vld [vmem:[%s1878 + $0x8] sm:$0xff]
    %s1881 = scalar_lea.vmem [#allocation7], 304
    %v1882 = vld [vmem:[%s1881] sm:$0xff]
    %v1883 = vld [vmem:[%s1881 + $0x8] sm:$0xff]
    %v1885 = vsel %vm52, %v1879, 0
    %v1888 = vsel %vm52, %v1880, 0
    %1890 = vmatprep.subr.mxu0 0.0
    %1891 = vmatpush1.msra.mxu0 0.0
    %1892 = vmatprep.subr.mxu0 0.0
    %1893 = vmatpush1.msra.mxu0 0.0
    %1894 = vmatprep.subr.mxu0 0.0
    %1895 = vmatpush1.msra.mxu0 0.0
    %1896 = vmatprep.subr.mxu0 0.0
    %1897 = vmatpush1.msra.mxu0 0.0
    %1898 = vmatprep.subr.mxu0 0.0
    %1899 = vmatpush1.msra.mxu0 0.0
    %1900 = vmatprep.subr.mxu0 0.0
    %1901 = vmatpush1.msra.mxu0 0.0
    %1902 = vmatprep.subr.mxu0 0.0
    %1903 = vmatpush1.msra.mxu0 0.0
    %1904 = vmatprep.subr.mxu0 0.0
    %1905 = vmatpush1.msra.mxu0 0.0
    %1906 = vmatprep.subr.mxu0 0.0
    %1907 = vmatpush1.msra.mxu0 0.0
    %1908 = vmatprep.subr.mxu0 0.0
    %1909 = vmatpush1.msra.mxu0 0.0
    %1910 = vmatprep.subr.mxu0 0.0
    %1911 = vmatpush1.msra.mxu0 0.0
    %1912 = vmatprep.subr.mxu0 0.0
    %1913 = vmatpush1.msra.mxu0 0.0
    %1914 = vmatprep.subr.mxu0 0.0
    %1915 = vmatpush1.msra.mxu0 0.0
    %1916 = vmatprep.subr.mxu0 0.0
    %1917 = vmatpush1.msra.mxu0 0.0
    %1918 = vmatprep.subr.mxu0 0.0
    %1919 = vmatpush1.msra.mxu0 %v1883
    %1920 = vmatprep.subr.mxu0 0.0
    %1921 = vmatpush1.msra.mxu0 %v1882
    %1922 = vmatprep.subr.mxu0 0.0
    %1923 = vmatpush2.msra.mxu0 0.0
    %1924 = vmatprep.subr.mxu0 0.0
    %1925 = vmatpush2.msra.mxu0 0.0
    %1926 = vmatprep.subr.mxu0 0.0
    %1927 = vmatpush2.msra.mxu0 0.0
    %1928 = vmatprep.subr.mxu0 0.0
    %1929 = vmatpush2.msra.mxu0 0.0
    %1930 = vmatprep.subr.mxu0 0.0
    %1931 = vmatpush2.msra.mxu0 0.0
    %1932 = vmatprep.subr.mxu0 0.0
    %1933 = vmatpush2.msra.mxu0 0.0
    %1934 = vmatprep.subr.mxu0 0.0
    %1935 = vmatpush2.msra.mxu0 0.0
    %1936 = vmatprep.subr.mxu0 0.0
    %1937 = vmatpush2.msra.mxu0 0.0
    %1938 = vmatprep.subr.mxu0 0.0
    %1939 = vmatpush2.msra.mxu0 0.0
    %1940 = vmatprep.subr.mxu0 0.0
    %1941 = vmatpush2.msra.mxu0 0.0
    %1942 = vmatprep.subr.mxu0 0.0
    %1943 = vmatpush2.msra.mxu0 0.0
    %1944 = vmatprep.subr.mxu0 0.0
    %1945 = vmatpush2.msra.mxu0 0.0
    %1946 = vmatprep.subr.mxu0 0.0
    %1947 = vmatpush2.msra.mxu0 0.0
    %1948 = vmatprep.subr.mxu0 0.0
    %1949 = vmatpush2.msra.mxu0 0.0
    %1950 = vmatprep.subr.mxu0 0.0
    %1951 = vmatpush2.msra.mxu0 0.0
    %1952 = vmatprep.subr.mxu0 0.0
    %1953 = vmatpush2.msra.mxu0 0.0
    %1954 = vmatprep.mubr.f32.mxu0 0.0
    %1955 = vmatmul.mubr.f32.gmra.mxu0 %v1885
    %v1956 = vpop.f32.mrf.mxu0
    %v1957 = vadd.f32 0.0, %v1956
    %v1958 = vpop.f32.mrf.mxu0
    %1959 = vmatprep.mubr.f32.mxu0 0.0
    %1960 = vmatmul.mubr.f32.gmra.mxu0 %v1888
    %v1961 = vpop.f32.mrf.mxu0
    %v1962 = vadd.f32 0.0, %v1961
    %v1963 = vpop.f32.mrf.mxu0
    %1964 = vdwg.mxu0
    %1967 = vrot.lane.b32.xlu0 %v1777, 32
    %v1968 = vpop.permute.xlu0 %1967
    %1969 = vrot.lane.b32.xlu0 %v1782, 32
    %v1970 = vpop.permute.xlu0 %1969
    %1975 = vrot.lane.b32.xlu0 %v1867, 64
    %v1976 = vpop.permute.xlu0 %1975
    %1977 = vrot.lane.b32.xlu0 %v1872, 64
    %v1978 = vpop.permute.xlu0 %1977
    %1983 = vrot.lane.b32.xlu0 %v1957, 96
    %v1984 = vpop.permute.xlu0 %1983
    %1985 = vrot.lane.b32.xlu0 %v1962, 96
    %v1986 = vpop.permute.xlu0 %1985
    %v1989 = vsel %vm425, %v1687, %v1968
    %v1990 = vsel %vm425, %v1692, %v1970
    %v1991 = vsel %vm428, %v1989, %v1976
    %v1992 = vsel %vm428, %v1990, %v1978
    %v1993 = vsel %vm431, %v1991, %v1984
    %v1994 = vsel %vm431, %v1992, %v1986
    %1995 = vst [vmem:[%s1602 + $0x8] sm:$0xff] %v1993
    %1996 = vst [vmem:[%s1602 + $0x20] sm:$0xff] %v1994
    %s1997 = sld [smem:[#allocation3 + $0x88]]
    %s1998 = smul.u32 %s1997, 16
    %s1999 = sadd.s32 %s1998, 192
    %s2000 = scalar_lea.vmem [#allocation4], %s1999
    %v2001 = vld [vmem:[%s2000] sm:$0xff]
    %v2002 = vld [vmem:[%s2000 + $0x8] sm:$0xff]
    %s2003 = scalar_lea.vmem [#allocation7], 320
    %v2004 = vld [vmem:[%s2003] sm:$0xff]
    %v2005 = vld [vmem:[%s2003 + $0x8] sm:$0xff]
    %v2007 = vsel %vm52, %v2001, 0
    %v2010 = vsel %vm52, %v2002, 0
    %2012 = vmatprep.subr.mxu0 0.0
    %2013 = vmatpush1.msra.mxu0 0.0
    %2014 = vmatprep.subr.mxu0 0.0
    %2015 = vmatpush1.msra.mxu0 0.0
    %2016 = vmatprep.subr.mxu0 0.0
    %2017 = vmatpush1.msra.mxu0 0.0
    %2018 = vmatprep.subr.mxu0 0.0
    %2019 = vmatpush1.msra.mxu0 0.0
    %2020 = vmatprep.subr.mxu0 0.0
    %2021 = vmatpush1.msra.mxu0 0.0
    %2022 = vmatprep.subr.mxu0 0.0
    %2023 = vmatpush1.msra.mxu0 0.0
    %2024 = vmatprep.subr.mxu0 0.0
    %2025 = vmatpush1.msra.mxu0 0.0
    %2026 = vmatprep.subr.mxu0 0.0
    %2027 = vmatpush1.msra.mxu0 0.0
    %2028 = vmatprep.subr.mxu0 0.0
    %2029 = vmatpush1.msra.mxu0 0.0
    %2030 = vmatprep.subr.mxu0 0.0
    %2031 = vmatpush1.msra.mxu0 0.0
    %2032 = vmatprep.subr.mxu0 0.0
    %2033 = vmatpush1.msra.mxu0 0.0
    %2034 = vmatprep.subr.mxu0 0.0
    %2035 = vmatpush1.msra.mxu0 0.0
    %2036 = vmatprep.subr.mxu0 0.0
    %2037 = vmatpush1.msra.mxu0 0.0
    %2038 = vmatprep.subr.mxu0 0.0
    %2039 = vmatpush1.msra.mxu0 0.0
    %2040 = vmatprep.subr.mxu0 0.0
    %2041 = vmatpush1.msra.mxu0 %v2005
    %2042 = vmatprep.subr.mxu0 0.0
    %2043 = vmatpush1.msra.mxu0 %v2004
    %2044 = vmatprep.subr.mxu0 0.0
    %2045 = vmatpush2.msra.mxu0 0.0
    %2046 = vmatprep.subr.mxu0 0.0
    %2047 = vmatpush2.msra.mxu0 0.0
    %2048 = vmatprep.subr.mxu0 0.0
    %2049 = vmatpush2.msra.mxu0 0.0
    %2050 = vmatprep.subr.mxu0 0.0
    %2051 = vmatpush2.msra.mxu0 0.0
    %2052 = vmatprep.subr.mxu0 0.0
    %2053 = vmatpush2.msra.mxu0 0.0
    %2054 = vmatprep.subr.mxu0 0.0
    %2055 = vmatpush2.msra.mxu0 0.0
    %2056 = vmatprep.subr.mxu0 0.0
    %2057 = vmatpush2.msra.mxu0 0.0
    %2058 = vmatprep.subr.mxu0 0.0
    %2059 = vmatpush2.msra.mxu0 0.0
    %2060 = vmatprep.subr.mxu0 0.0
    %2061 = vmatpush2.msra.mxu0 0.0
    %2062 = vmatprep.subr.mxu0 0.0
    %2063 = vmatpush2.msra.mxu0 0.0
    %2064 = vmatprep.subr.mxu0 0.0
    %2065 = vmatpush2.msra.mxu0 0.0
    %2066 = vmatprep.subr.mxu0 0.0
    %2067 = vmatpush2.msra.mxu0 0.0
    %2068 = vmatprep.subr.mxu0 0.0
    %2069 = vmatpush2.msra.mxu0 0.0
    %2070 = vmatprep.subr.mxu0 0.0
    %2071 = vmatpush2.msra.mxu0 0.0
    %2072 = vmatprep.subr.mxu0 0.0
    %2073 = vmatpush2.msra.mxu0 0.0
    %2074 = vmatprep.subr.mxu0 0.0
    %2075 = vmatpush2.msra.mxu0 0.0
    %2076 = vmatprep.mubr.f32.mxu0 0.0
    %2077 = vmatmul.mubr.f32.gmra.mxu0 %v2007
    %v2078 = vpop.f32.mrf.mxu0
    %v2079 = vadd.f32 0.0, %v2078
    %v2080 = vpop.f32.mrf.mxu0
    %2081 = vmatprep.mubr.f32.mxu0 0.0
    %2082 = vmatmul.mubr.f32.gmra.mxu0 %v2010
    %v2083 = vpop.f32.mrf.mxu0
    %v2084 = vadd.f32 0.0, %v2083
    %v2085 = vpop.f32.mrf.mxu0
    %2086 = vdwg.mxu0
    %s2087 = sld [smem:[#allocation3 + $0x89]]
    %s2088 = smul.u32 %s2087, 16
    %s2089 = sadd.s32 %s2088, 192
    %s2090 = scalar_lea.vmem [#allocation4], %s2089
    %v2091 = vld [vmem:[%s2090] sm:$0xff]
    %v2092 = vld [vmem:[%s2090 + $0x8] sm:$0xff]
    %s2093 = scalar_lea.vmem [#allocation7], 336
    %v2094 = vld [vmem:[%s2093] sm:$0xff]
    %v2095 = vld [vmem:[%s2093 + $0x8] sm:$0xff]
    %v2097 = vsel %vm52, %v2091, 0
    %v2100 = vsel %vm52, %v2092, 0
    %2102 = vmatprep.subr.mxu0 0.0
    %2103 = vmatpush1.msra.mxu0 0.0
    %2104 = vmatprep.subr.mxu0 0.0
    %2105 = vmatpush1.msra.mxu0 0.0
    %2106 = vmatprep.subr.mxu0 0.0
    %2107 = vmatpush1.msra.mxu0 0.0
    %2108 = vmatprep.subr.mxu0 0.0
    %2109 = vmatpush1.msra.mxu0 0.0
    %2110 = vmatprep.subr.mxu0 0.0
    %2111 = vmatpush1.msra.mxu0 0.0
    %2112 = vmatprep.subr.mxu0 0.0
    %2113 = vmatpush1.msra.mxu0 0.0
    %2114 = vmatprep.subr.mxu0 0.0
    %2115 = vmatpush1.msra.mxu0 0.0
    %2116 = vmatprep.subr.mxu0 0.0
    %2117 = vmatpush1.msra.mxu0 0.0
    %2118 = vmatprep.subr.mxu0 0.0
    %2119 = vmatpush1.msra.mxu0 0.0
    %2120 = vmatprep.subr.mxu0 0.0
    %2121 = vmatpush1.msra.mxu0 0.0
    %2122 = vmatprep.subr.mxu0 0.0
    %2123 = vmatpush1.msra.mxu0 0.0
    %2124 = vmatprep.subr.mxu0 0.0
    %2125 = vmatpush1.msra.mxu0 0.0
    %2126 = vmatprep.subr.mxu0 0.0
    %2127 = vmatpush1.msra.mxu0 0.0
    %2128 = vmatprep.subr.mxu0 0.0
    %2129 = vmatpush1.msra.mxu0 0.0
    %2130 = vmatprep.subr.mxu0 0.0
    %2131 = vmatpush1.msra.mxu0 %v2095
    %2132 = vmatprep.subr.mxu0 0.0
    %2133 = vmatpush1.msra.mxu0 %v2094
    %2134 = vmatprep.subr.mxu0 0.0
    %2135 = vmatpush2.msra.mxu0 0.0
    %2136 = vmatprep.subr.mxu0 0.0
    %2137 = vmatpush2.msra.mxu0 0.0
    %2138 = vmatprep.subr.mxu0 0.0
    %2139 = vmatpush2.msra.mxu0 0.0
    %2140 = vmatprep.subr.mxu0 0.0
    %2141 = vmatpush2.msra.mxu0 0.0
    %2142 = vmatprep.subr.mxu0 0.0
    %2143 = vmatpush2.msra.mxu0 0.0
    %2144 = vmatprep.subr.mxu0 0.0
    %2145 = vmatpush2.msra.mxu0 0.0
    %2146 = vmatprep.subr.mxu0 0.0
    %2147 = vmatpush2.msra.mxu0 0.0
    %2148 = vmatprep.subr.mxu0 0.0
    %2149 = vmatpush2.msra.mxu0 0.0
    %2150 = vmatprep.subr.mxu0 0.0
    %2151 = vmatpush2.msra.mxu0 0.0
    %2152 = vmatprep.subr.mxu0 0.0
    %2153 = vmatpush2.msra.mxu0 0.0
    %2154 = vmatprep.subr.mxu0 0.0
    %2155 = vmatpush2.msra.mxu0 0.0
    %2156 = vmatprep.subr.mxu0 0.0
    %2157 = vmatpush2.msra.mxu0 0.0
    %2158 = vmatprep.subr.mxu0 0.0
    %2159 = vmatpush2.msra.mxu0 0.0
    %2160 = vmatprep.subr.mxu0 0.0
    %2161 = vmatpush2.msra.mxu0 0.0
    %2162 = vmatprep.subr.mxu0 0.0
    %2163 = vmatpush2.msra.mxu0 0.0
    %2164 = vmatprep.subr.mxu0 0.0
    %2165 = vmatpush2.msra.mxu0 0.0
    %2166 = vmatprep.mubr.f32.mxu0 0.0
    %2167 = vmatmul.mubr.f32.gmra.mxu0 %v2097
    %v2168 = vpop.f32.mrf.mxu0
    %v2169 = vadd.f32 0.0, %v2168
    %v2170 = vpop.f32.mrf.mxu0
    %2171 = vmatprep.mubr.f32.mxu0 0.0
    %2172 = vmatmul.mubr.f32.gmra.mxu0 %v2100
    %v2173 = vpop.f32.mrf.mxu0
    %v2174 = vadd.f32 0.0, %v2173
    %v2175 = vpop.f32.mrf.mxu0
    %2176 = vdwg.mxu0
    %s2177 = sld [smem:[#allocation3 + $0x8a]]
    %s2178 = smul.u32 %s2177, 16
    %s2179 = sadd.s32 %s2178, 192
    %s2180 = scalar_lea.vmem [#allocation4], %s2179
    %v2181 = vld [vmem:[%s2180] sm:$0xff]
    %v2182 = vld [vmem:[%s2180 + $0x8] sm:$0xff]
    %s2183 = scalar_lea.vmem [#allocation7], 352
    %v2184 = vld [vmem:[%s2183] sm:$0xff]
    %v2185 = vld [vmem:[%s2183 + $0x8] sm:$0xff]
    %v2187 = vsel %vm52, %v2181, 0
    %v2190 = vsel %vm52, %v2182, 0
    %2192 = vmatprep.subr.mxu0 0.0
    %2193 = vmatpush1.msra.mxu0 0.0
    %2194 = vmatprep.subr.mxu0 0.0
    %2195 = vmatpush1.msra.mxu0 0.0
    %2196 = vmatprep.subr.mxu0 0.0
    %2197 = vmatpush1.msra.mxu0 0.0
    %2198 = vmatprep.subr.mxu0 0.0
    %2199 = vmatpush1.msra.mxu0 0.0
    %2200 = vmatprep.subr.mxu0 0.0
    %2201 = vmatpush1.msra.mxu0 0.0
    %2202 = vmatprep.subr.mxu0 0.0
    %2203 = vmatpush1.msra.mxu0 0.0
    %2204 = vmatprep.subr.mxu0 0.0
    %2205 = vmatpush1.msra.mxu0 0.0
    %2206 = vmatprep.subr.mxu0 0.0
    %2207 = vmatpush1.msra.mxu0 0.0
    %2208 = vmatprep.subr.mxu0 0.0
    %2209 = vmatpush1.msra.mxu0 0.0
    %2210 = vmatprep.subr.mxu0 0.0
    %2211 = vmatpush1.msra.mxu0 0.0
    %2212 = vmatprep.subr.mxu0 0.0
    %2213 = vmatpush1.msra.mxu0 0.0
    %2214 = vmatprep.subr.mxu0 0.0
    %2215 = vmatpush1.msra.mxu0 0.0
    %2216 = vmatprep.subr.mxu0 0.0
    %2217 = vmatpush1.msra.mxu0 0.0
    %2218 = vmatprep.subr.mxu0 0.0
    %2219 = vmatpush1.msra.mxu0 0.0
    %2220 = vmatprep.subr.mxu0 0.0
    %2221 = vmatpush1.msra.mxu0 %v2185
    %2222 = vmatprep.subr.mxu0 0.0
    %2223 = vmatpush1.msra.mxu0 %v2184
    %2224 = vmatprep.subr.mxu0 0.0
    %2225 = vmatpush2.msra.mxu0 0.0
    %2226 = vmatprep.subr.mxu0 0.0
    %2227 = vmatpush2.msra.mxu0 0.0
    %2228 = vmatprep.subr.mxu0 0.0
    %2229 = vmatpush2.msra.mxu0 0.0
    %2230 = vmatprep.subr.mxu0 0.0
    %2231 = vmatpush2.msra.mxu0 0.0
    %2232 = vmatprep.subr.mxu0 0.0
    %2233 = vmatpush2.msra.mxu0 0.0
    %2234 = vmatprep.subr.mxu0 0.0
    %2235 = vmatpush2.msra.mxu0 0.0
    %2236 = vmatprep.subr.mxu0 0.0
    %2237 = vmatpush2.msra.mxu0 0.0
    %2238 = vmatprep.subr.mxu0 0.0
    %2239 = vmatpush2.msra.mxu0 0.0
    %2240 = vmatprep.subr.mxu0 0.0
    %2241 = vmatpush2.msra.mxu0 0.0
    %2242 = vmatprep.subr.mxu0 0.0
    %2243 = vmatpush2.msra.mxu0 0.0
    %2244 = vmatprep.subr.mxu0 0.0
    %2245 = vmatpush2.msra.mxu0 0.0
    %2246 = vmatprep.subr.mxu0 0.0
    %2247 = vmatpush2.msra.mxu0 0.0
    %2248 = vmatprep.subr.mxu0 0.0
    %2249 = vmatpush2.msra.mxu0 0.0
    %2250 = vmatprep.subr.mxu0 0.0
    %2251 = vmatpush2.msra.mxu0 0.0
    %2252 = vmatprep.subr.mxu0 0.0
    %2253 = vmatpush2.msra.mxu0 0.0
    %2254 = vmatprep.subr.mxu0 0.0
    %2255 = vmatpush2.msra.mxu0 0.0
    %2256 = vmatprep.mubr.f32.mxu0 0.0
    %2257 = vmatmul.mubr.f32.gmra.mxu0 %v2187
    %v2258 = vpop.f32.mrf.mxu0
    %v2259 = vadd.f32 0.0, %v2258
    %v2260 = vpop.f32.mrf.mxu0
    %2261 = vmatprep.mubr.f32.mxu0 0.0
    %2262 = vmatmul.mubr.f32.gmra.mxu0 %v2190
    %v2263 = vpop.f32.mrf.mxu0
    %v2264 = vadd.f32 0.0, %v2263
    %v2265 = vpop.f32.mrf.mxu0
    %2266 = vdwg.mxu0
    %s2267 = sld [smem:[#allocation3 + $0x8b]]
    %s2268 = smul.u32 %s2267, 16
    %s2269 = sadd.s32 %s2268, 192
    %s2270 = scalar_lea.vmem [#allocation4], %s2269
    %v2271 = vld [vmem:[%s2270] sm:$0xff]
    %v2272 = vld [vmem:[%s2270 + $0x8] sm:$0xff]
    %s2273 = scalar_lea.vmem [#allocation7], 368
    %v2274 = vld [vmem:[%s2273] sm:$0xff]
    %v2275 = vld [vmem:[%s2273 + $0x8] sm:$0xff]
    %v2277 = vsel %vm52, %v2271, 0
    %v2280 = vsel %vm52, %v2272, 0
    %2282 = vmatprep.subr.mxu0 0.0
    %2283 = vmatpush1.msra.mxu0 0.0
    %2284 = vmatprep.subr.mxu0 0.0
    %2285 = vmatpush1.msra.mxu0 0.0
    %2286 = vmatprep.subr.mxu0 0.0
    %2287 = vmatpush1.msra.mxu0 0.0
    %2288 = vmatprep.subr.mxu0 0.0
    %2289 = vmatpush1.msra.mxu0 0.0
    %2290 = vmatprep.subr.mxu0 0.0
    %2291 = vmatpush1.msra.mxu0 0.0
    %2292 = vmatprep.subr.mxu0 0.0
    %2293 = vmatpush1.msra.mxu0 0.0
    %2294 = vmatprep.subr.mxu0 0.0
    %2295 = vmatpush1.msra.mxu0 0.0
    %2296 = vmatprep.subr.mxu0 0.0
    %2297 = vmatpush1.msra.mxu0 0.0
    %2298 = vmatprep.subr.mxu0 0.0
    %2299 = vmatpush1.msra.mxu0 0.0
    %2300 = vmatprep.subr.mxu0 0.0
    %2301 = vmatpush1.msra.mxu0 0.0
    %2302 = vmatprep.subr.mxu0 0.0
    %2303 = vmatpush1.msra.mxu0 0.0
    %2304 = vmatprep.subr.mxu0 0.0
    %2305 = vmatpush1.msra.mxu0 0.0
    %2306 = vmatprep.subr.mxu0 0.0
    %2307 = vmatpush1.msra.mxu0 0.0
    %2308 = vmatprep.subr.mxu0 0.0
    %2309 = vmatpush1.msra.mxu0 0.0
    %2310 = vmatprep.subr.mxu0 0.0
    %2311 = vmatpush1.msra.mxu0 %v2275
    %2312 = vmatprep.subr.mxu0 0.0
    %2313 = vmatpush1.msra.mxu0 %v2274
    %2314 = vmatprep.subr.mxu0 0.0
    %2315 = vmatpush2.msra.mxu0 0.0
    %2316 = vmatprep.subr.mxu0 0.0
    %2317 = vmatpush2.msra.mxu0 0.0
    %2318 = vmatprep.subr.mxu0 0.0
    %2319 = vmatpush2.msra.mxu0 0.0
    %2320 = vmatprep.subr.mxu0 0.0
    %2321 = vmatpush2.msra.mxu0 0.0
    %2322 = vmatprep.subr.mxu0 0.0
    %2323 = vmatpush2.msra.mxu0 0.0
    %2324 = vmatprep.subr.mxu0 0.0
    %2325 = vmatpush2.msra.mxu0 0.0
    %2326 = vmatprep.subr.mxu0 0.0
    %2327 = vmatpush2.msra.mxu0 0.0
    %2328 = vmatprep.subr.mxu0 0.0
    %2329 = vmatpush2.msra.mxu0 0.0
    %2330 = vmatprep.subr.mxu0 0.0
    %2331 = vmatpush2.msra.mxu0 0.0
    %2332 = vmatprep.subr.mxu0 0.0
    %2333 = vmatpush2.msra.mxu0 0.0
    %2334 = vmatprep.subr.mxu0 0.0
    %2335 = vmatpush2.msra.mxu0 0.0
    %2336 = vmatprep.subr.mxu0 0.0
    %2337 = vmatpush2.msra.mxu0 0.0
    %2338 = vmatprep.subr.mxu0 0.0
    %2339 = vmatpush2.msra.mxu0 0.0
    %2340 = vmatprep.subr.mxu0 0.0
    %2341 = vmatpush2.msra.mxu0 0.0
    %2342 = vmatprep.subr.mxu0 0.0
    %2343 = vmatpush2.msra.mxu0 0.0
    %2344 = vmatprep.subr.mxu0 0.0
    %2345 = vmatpush2.msra.mxu0 0.0
    %2346 = vmatprep.mubr.f32.mxu0 0.0
    %2347 = vmatmul.mubr.f32.gmra.mxu0 %v2277
    %v2348 = vpop.f32.mrf.mxu0
    %v2349 = vadd.f32 0.0, %v2348
    %v2350 = vpop.f32.mrf.mxu0
    %2351 = vmatprep.mubr.f32.mxu0 0.0
    %2352 = vmatmul.mubr.f32.gmra.mxu0 %v2280
    %v2353 = vpop.f32.mrf.mxu0
    %v2354 = vadd.f32 0.0, %v2353
    %v2355 = vpop.f32.mrf.mxu0
    %2356 = vdwg.mxu0
    %2359 = vrot.lane.b32.xlu0 %v2169, 32
    %v2360 = vpop.permute.xlu0 %2359
    %2361 = vrot.lane.b32.xlu0 %v2174, 32
    %v2362 = vpop.permute.xlu0 %2361
    %2367 = vrot.lane.b32.xlu0 %v2259, 64
    %v2368 = vpop.permute.xlu0 %2367
    %2369 = vrot.lane.b32.xlu0 %v2264, 64
    %v2370 = vpop.permute.xlu0 %2369
    %2375 = vrot.lane.b32.xlu0 %v2349, 96
    %v2376 = vpop.permute.xlu0 %2375
    %2377 = vrot.lane.b32.xlu0 %v2354, 96
    %v2378 = vpop.permute.xlu0 %2377
    %v2381 = vsel %vm425, %v2079, %v2360
    %v2382 = vsel %vm425, %v2084, %v2362
    %v2383 = vsel %vm428, %v2381, %v2368
    %v2384 = vsel %vm428, %v2382, %v2370
    %v2385 = vsel %vm431, %v2383, %v2376
    %v2386 = vsel %vm431, %v2384, %v2378
    %2387 = vst [vmem:[%s1602 + $0x10] sm:$0xff] %v2385
    %2388 = vst [vmem:[%s1602 + $0x28] sm:$0xff] %v2386
    // Predicated region
    $region18: #{tpu_custom_call.1} parent=1 // pred_check
      _
    $region19: #{tpu_custom_call.1} parent=1 // pred_check_branch
      %2390 = sbr.rel (0) target = $region21
    $region20: #{tpu_custom_call.1} parent=1 // pred_region
      %s2392 = ssub.s32 1536, 1536
      %2393 = vsyncadd [#allocation6], %s2392
      %s2394 = sshll.u32 [#allocation9], 4
      %s2395 = int_to_ptr.vmem [resolvable:$true] %s2394
      %2400 = dma.vmem_to_hbm [thread:$0]  %s2395, 1536, %s3, [#allocation6], 384, 384, 24
    $region21: #{tpu_custom_call.1} parent=1 // pred_fallthru
      _
    // Predicated region
    $region22: #{tpu_custom_call.1} parent=1 // pred_check
      _
    $region23: #{tpu_custom_call.1} parent=1 // pred_check_branch
      %2402 = sbr.rel (0) target = $region25
    $region24: #{tpu_custom_call.1} parent=1 // pred_region
      %2403 = dma.done [#allocation6], 1536
    $region25: #{tpu_custom_call.1} parent=1 // pred_fallthru
      _
    %2404 = vsyncpa [#allocation5], 1
    %2405 = vsyncpa [#allocation8], 1
    %2406 = vsyncpa [#allocation6], 1

</llo_original>
